<compile_context>
chip_gen: v5e
topology: v5e:2x2
jax: 0.10.0
libtpu: 0.0.40
codegen_flags: <defaults>
</compile_context>

<pallas_src>
import functools
import math

import jax
import jax.numpy as jnp
from jax.experimental import pallas as pl
from jax.experimental.pallas import tpu as pltpu


def _layer_norm(x, gamma, beta, eps=1e-5):
    """Post-norm LayerNorm over the last axis, f32 math (matches nn.LayerNorm)."""
    mu = jnp.mean(x, axis=-1, keepdims=True)
    var = jnp.mean((x - mu) ** 2, axis=-1, keepdims=True)
    return (x - mu) * jax.lax.rsqrt(var + eps) * gamma + beta


# ----------------------------------------------------------------------------
# Fused Pallas kernel: the whole Transformer-encoder stack.
# grid = (num_layers,); activations resident in VMEM across layers.
# ----------------------------------------------------------------------------
def _encoder_stack_kernel(n_heads, speech_pad_len,
                          sp_len_ref, sc_len_ref,          # scalar prefetch (SMEM)
                          x_ref, pe_ref,
                          wqkv_ref, wo_ref, w1_ref, w2_ref, pvec_ref,
                          o_ref):
    layer = pl.program_id(0)
    B, L, H = x_ref.shape
    F = w1_ref.shape[2]
    dh = H // n_heads
    scale = 1.0 / math.sqrt(dh)

    # ---- layer 0: initialise the resident activation with x + positional enc.
    @pl.when(layer == 0)
    def _():
        o_ref[...] = x_ref[...] + pe_ref[...][None]

    z = o_ref[...]                                    # [B, L, H] f32 (VMEM resident)

    # ---- per-layer parameters (streamed, double-buffered across layers) -----
    wqkv = wqkv_ref[0]                                # [H, 3H] bf16
    wo = wo_ref[0]                                    # [H, H]  bf16
    w1 = w1_ref[0]                                    # [H, F]  bf16
    w2 = w2_ref[0]                                    # [F, H]  bf16
    pv = pvec_ref[0]                                  # [8, W]  f32 packed vectors
    b_qkv = pv[0:1, :3 * H]
    b_o = pv[1:2, :H]
    b_1 = pv[2:3, :F]
    b_2 = pv[3:4, :H]
    ln1g, ln1b = pv[4:5, :H], pv[5:6, :H]
    ln2g, ln2b = pv[6:7, :H], pv[7:8, :H]

    # ---- fused QKV projection (one [L,H]x[H,3H] MXU matmul per batch elem) --
    qkv = []
    for b in range(B):
        qkv.append(jnp.dot(z[b].astype(jnp.bfloat16), wqkv,
                           preferred_element_type=jnp.float32) + b_qkv)   # [L, 3H]

    # ---- head-batched attention over G = B * n_heads groups -----------------
    def head(t, base, h):
        return t[:, base + h * dh: base + (h + 1) * dh]

    qh = jnp.stack([head(qkv[b], 0, h)
                    for b in range(B) for h in range(n_heads)])           # [G, L, dh]
    kh = jnp.stack([head(qkv[b], H, h)
                    for b in range(B) for h in range(n_heads)])
    vh = jnp.stack([head(qkv[b], 2 * H, h)
                    for b in range(B) for h in range(n_heads)])

    # additive key-padding mask built in-kernel from SMEM lengths
    pos = jax.lax.broadcasted_iota(jnp.int32, (1, L), 1)
    mask_rows = []
    for b in range(B):
        spl = sp_len_ref[b]
        scl = sc_len_ref[b]
        valid = (pos < spl) | ((pos >= speech_pad_len) &
                               (pos < speech_pad_len + scl))
        mask_rows.append(jnp.where(valid, 0.0, -1e9).astype(jnp.float32))  # [1, L]
    mask_g = jnp.stack([mask_rows[b]
                        for b in range(B) for _ in range(n_heads)])        # [G, 1, L]

    s = jnp.einsum("gqd,gkd->gqk",
                   qh.astype(jnp.bfloat16), kh.astype(jnp.bfloat16),
                   preferred_element_type=jnp.float32) * scale             # [G, L, L]
    s = s + mask_g
    s = s - jnp.max(s, axis=-1, keepdims=True)
    p = jnp.exp(s)
    p = p * pl.reciprocal(jnp.sum(p, axis=-1, keepdims=True), approx=True)
    ctx = jnp.einsum("gqk,gkd->gqd",
                     p.astype(jnp.bfloat16), vh.astype(jnp.bfloat16),
                     preferred_element_type=jnp.float32)                   # [G, L, dh]

    # ---- output projection, residual/LayerNorm, FFN (post-norm layer) -------
    for b in range(B):
        ctx_b = jnp.concatenate([ctx[b * n_heads + h] for h in range(n_heads)],
                                axis=-1)                                   # [L, H]
        attn = jnp.dot(ctx_b.astype(jnp.bfloat16), wo,
                       preferred_element_type=jnp.float32) + b_o
        y = _layer_norm(z[b] + attn, ln1g, ln1b)

        h1 = jnp.maximum(jnp.dot(y.astype(jnp.bfloat16), w1,
                                 preferred_element_type=jnp.float32) + b_1, 0.0)
        h2 = jnp.dot(h1.astype(jnp.bfloat16), w2,
                     preferred_element_type=jnp.float32) + b_2

        o_ref[b] = _layer_norm(y + h2, ln2g, ln2b).astype(o_ref.dtype)


# ----------------------------------------------------------------------------
# Wrapper: concat, scalar-prefetch lengths, fused encoder call, output split.
# ----------------------------------------------------------------------------
def sinusoidal_pe(L, H):
    pos = jnp.arange(L, dtype=jnp.float32)[:, None]
    i = jnp.arange(H // 2, dtype=jnp.float32)[None, :]
    angle = pos / jnp.power(10000.0, 2.0 * i / H)
    pe = jnp.zeros((L, H), jnp.float32)
    pe = pe.at[:, 0::2].set(jnp.sin(angle))
    pe = pe.at[:, 1::2].set(jnp.cos(angle))
    return pe


def speech_sql_net_encoder(speech_outputs, schema_outputs,
                           speech_len, schema_len, params, n_heads):
    """Mirrors SpeechSQLNet.get_decoder_inputs' tensor math.

    speech_outputs: [B, Ls, H]  (stands in for wav2vec2 outputs)
    schema_outputs: [B, Lsc, H] (stands in for padded schema embeddings)
    returns (encoder_outputs [B, Ls, H], schema_outputs [B, Lsc, H])
    """
    B, Ls, H = speech_outputs.shape
    Lsc = schema_outputs.shape[1]
    L = Ls + Lsc

    # encoder_inputs = torch.cat([speech_outputs, schema_outputs], axis=1)
    x = jnp.concatenate([speech_outputs, schema_outputs], axis=1).astype(jnp.float32)
    pe = sinusoidal_pe(L, H)

    wqkv, wo, w1, w2, pvec = (params["wqkv"], params["wo"], params["w1"],
                              params["w2"], params["pvec"])
    NL = wqkv.shape[0]
    F = w1.shape[2]
    W = pvec.shape[2]

    kernel = functools.partial(_encoder_stack_kernel, n_heads, Ls)

    grid_spec = pltpu.PrefetchScalarGridSpec(
        num_scalar_prefetch=2,                  # speech_len, schema_len -> SMEM
        grid=(NL,),                             # one grid step per encoder layer
        in_specs=[
            pl.BlockSpec((B, L, H), lambda l, *_: (0, 0, 0)),      # x (copied once)
            pl.BlockSpec((L, H), lambda l, *_: (0, 0)),            # PE (copied once)
            pl.BlockSpec((1, H, 3 * H), lambda l, *_: (l, 0, 0)),  # fused QKV weight
            pl.BlockSpec((1, H, H), lambda l, *_: (l, 0, 0)),      # out-proj weight
            pl.BlockSpec((1, H, F), lambda l, *_: (l, 0, 0)),      # FFN weight 1
            pl.BlockSpec((1, F, H), lambda l, *_: (l, 0, 0)),      # FFN weight 2
            pl.BlockSpec((1, 8, W), lambda l, *_: (l, 0, 0)),      # packed biases/LN
        ],
        out_specs=pl.BlockSpec((B, L, H), lambda l, *_: (0, 0, 0)),  # VMEM-resident acc
    )

    enc = pl.pallas_call(
        kernel,
        out_shape=jax.ShapeDtypeStruct((B, L, H), jnp.float32),
        grid_spec=grid_spec,
        compiler_params=pltpu.CompilerParams(
            dimension_semantics=("arbitrary",)),   # layers are sequential
    )(speech_len.astype(jnp.int32), schema_len.astype(jnp.int32),
      x, pe, wqkv, wo, w1, w2, pvec)

    # schema_outputs = encoder_outputs[:, -schema_len:]; encoder_outputs rest
    encoder_out = enc[:, :-Lsc]
    schema_out = enc[:, -Lsc:]
    return encoder_out, schema_out


# ----------------------------------------------------------------------------
# Deterministic parameter init (shapes from cfg.TRANSFORMER.*, shrunk).
# Weights stored bf16 (MXU operands); biases / LayerNorm params packed f32.
# ----------------------------------------------------------------------------
def init_encoder_params(key, num_layers, H, F):
    W = max(3 * H, F)
    s_h = 1.0 / math.sqrt(H)
    s_f = 1.0 / math.sqrt(F)
    keys = jax.random.split(key, num_layers)
    wqkv_l, wo_l, w1_l, w2_l, pvec_l = [], [], [], [], []
    for k in keys:
        k1, k2, k3, k4 = jax.random.split(k, 4)
        wqkv_l.append(jax.random.uniform(k1, (H, 3 * H), jnp.float32, -s_h, s_h))
        wo_l.append(jax.random.uniform(k2, (H, H), jnp.float32, -s_h, s_h))
        w1_l.append(jax.random.uniform(k3, (H, F), jnp.float32, -s_h, s_h))
        w2_l.append(jax.random.uniform(k4, (F, H), jnp.float32, -s_f, s_f))
        # packed small vectors: rows = [b_qkv, b_o, b_1, b_2, ln1g, ln1b, ln2g, ln2b]
        pv = jnp.zeros((8, W), jnp.float32)
        pv = pv.at[4, :H].set(1.0).at[6, :H].set(1.0)   # LayerNorm gammas = 1
        pvec_l.append(pv)
    return {
        "wqkv": jnp.stack(wqkv_l).astype(jnp.bfloat16),   # [NL, H, 3H]
        "wo":   jnp.stack(wo_l).astype(jnp.bfloat16),     # [NL, H, H]
        "w1":   jnp.stack(w1_l).astype(jnp.bfloat16),     # [NL, H, F]
        "w2":   jnp.stack(w2_l).astype(jnp.bfloat16),     # [NL, F, H]
        "pvec": jnp.stack(pvec_l),                        # [NL, 8, W] f32
    }


# TODO(synk): wav2vec2 speech encoder, TextEncoder/Batch preprocessing, the
# BiLSTM (encoder_lstm), MultiLayerGCN (use_gcn branch) and the grammar-driven
# SQLDecoder are external / data-dependent modules with no clean Pallas
# equivalent; the kernel covers the Transformer-encoder hot path plus the
# concat / positional-encoding / padding-mask / split tensor math.

if __name__ == "__main__":
    key = jax.random.PRNGKey(0)

    # Small shapes consistent with the module's forward:
    B = 2          # batch of examples
    Ls = 8         # padded speech-frame sequence length (wav2vec2 outputs)
    Lsc = 4        # padded schema sequence length (pad_sequence batch_first)
    H = 32         # cfg.TRANSFORMER.hidden_size (shrunk)
    NH = 4         # cfg.TRANSFORMER.n_heads
    FF = 64        # cfg.TRANSFORMER.dim_feedforward
    NL = 2         # cfg.TRANSFORMER.num_layers

    k_sp, k_sc, k_par = jax.random.split(key, 3)
    speech_outputs = jax.random.normal(k_sp, (B, Ls, H), jnp.float32)
    schema_outputs = jax.random.normal(k_sc, (B, Lsc, H), jnp.float32)
    speech_len = jnp.array([8, 6], jnp.int32)   # decoder_speeches_len
    schema_len = jnp.array([4, 3], jnp.int32)   # batch.schema_sents_len

    params = init_encoder_params(k_par, NL, H, FF)

    enc_out, schema_out = speech_sql_net_encoder(
        speech_outputs, schema_outputs, speech_len, schema_len, params, NH)
    jax.block_until_ready(enc_out)
    jax.block_until_ready(schema_out)

    assert enc_out.shape == (B, Ls, H)
    assert schema_out.shape == (B, Lsc, H)
    assert bool(jnp.all(jnp.isfinite(enc_out)))
    assert bool(jnp.all(jnp.isfinite(schema_out)))
    print("KERNEL_OK")
</pallas_src>

<mosaic_0001>
module attributes {stable_mosaic.version = 11 : i64} {
  func.func @_encoder_stack_kernel(%arg0: i32, %arg1: memref<2xi32, #tpu.memory_space<smem>>, %arg2: memref<2xi32, #tpu.memory_space<smem>>, %arg3: memref<2x12x32xf32, #tpu.memory_space<vmem>>, %arg4: memref<12x32xf32, #tpu.memory_space<vmem>>, %arg5: memref<1x32x96xbf16, #tpu.memory_space<vmem>>, %arg6: memref<1x32x32xbf16, #tpu.memory_space<vmem>>, %arg7: memref<1x32x64xbf16, #tpu.memory_space<vmem>>, %arg8: memref<1x64x32xbf16, #tpu.memory_space<vmem>>, %arg9: memref<1x8x96xf32, #tpu.memory_space<vmem>>, %arg10: memref<2x12x32xf32, #tpu.memory_space<vmem>>) attributes {dimension_semantics = [#tpu.dimension_semantics<arbitrary>], iteration_bounds = array<i64: 2>, scalar_prefetch = 2 : i64, scratch_operands = 0 : i64, tpu.core_type = #tpu.core_type<tc>, window_params = [{pipeline_mode = #tpu.pipeline_mode<synchronous>, transform_indices = @transform_0, window_bounds = array<i64: 2, 12, 32>}, {pipeline_mode = #tpu.pipeline_mode<synchronous>, transform_indices = @transform_1, window_bounds = array<i64: 12, 32>}, {transform_indices = @transform_2, window_bounds = array<i64: 1, 32, 96>}, {transform_indices = @transform_3, window_bounds = array<i64: 1, 32, 32>}, {transform_indices = @transform_4, window_bounds = array<i64: 1, 32, 64>}, {transform_indices = @transform_5, window_bounds = array<i64: 1, 64, 32>}, {transform_indices = @transform_6, window_bounds = array<i64: 1, 8, 96>}, {pipeline_mode = #tpu.pipeline_mode<synchronous>, transform_indices = @transform_7, window_bounds = array<i64: 2, 12, 32>}]} {
    %c0_i32 = arith.constant 0 : i32
    %0 = arith.cmpi eq, %arg0, %c0_i32 : i32
    %1 = arith.extui %0 : i1 to i32
    %c0_i32_0 = arith.constant 0 : i32
    %2 = arith.cmpi ne, %1, %c0_i32_0 : i32
    scf.if %2 {
      %c0_68 = arith.constant 0 : index
      %c0_69 = arith.constant 0 : index
      %c0_70 = arith.constant 0 : index
      %291 = vector.load %arg3[%c0_68, %c0_69, %c0_70] : memref<2x12x32xf32, #tpu.memory_space<vmem>>, vector<2x12x32xf32>
      %c0_71 = arith.constant 0 : index
      %c0_72 = arith.constant 0 : index
      %292 = vector.load %arg4[%c0_71, %c0_72] : memref<12x32xf32, #tpu.memory_space<vmem>>, vector<12x32xf32>
      %293 = vector.shape_cast %292 : vector<12x32xf32> to vector<1x12x32xf32>
      %294 = vector.broadcast %293 : vector<1x12x32xf32> to vector<2x12x32xf32>
      %295 = arith.addf %291, %294 : vector<2x12x32xf32>
      %c0_73 = arith.constant 0 : index
      %c0_74 = arith.constant 0 : index
      %c0_75 = arith.constant 0 : index
      %296 = vector.load %arg10[%c0_73, %c0_74, %c0_75] : memref<2x12x32xf32, #tpu.memory_space<vmem>>, vector<2x12x32xf32>
      tpu.vector_store %arg10[%c0_73, %c0_74, %c0_75], %295 {strides = array<i32>} : memref<2x12x32xf32, #tpu.memory_space<vmem>>, vector<2x12x32xf32>,
    } else {
    }
    %c0 = arith.constant 0 : index
    %c0_1 = arith.constant 0 : index
    %c0_2 = arith.constant 0 : index
    %3 = vector.load %arg10[%c0, %c0_1, %c0_2] : memref<2x12x32xf32, #tpu.memory_space<vmem>>, vector<2x12x32xf32>
    %c0_3 = arith.constant 0 : index
    %c0_4 = arith.constant 0 : index
    %c0_5 = arith.constant 0 : index
    %4 = vector.load %arg5[%c0_3, %c0_4, %c0_5] : memref<1x32x96xbf16, #tpu.memory_space<vmem>>, vector<1x32x96xbf16>
    %5 = vector.shape_cast %4 : vector<1x32x96xbf16> to vector<32x96xbf16>
    %c0_6 = arith.constant 0 : index
    %c0_7 = arith.constant 0 : index
    %c0_8 = arith.constant 0 : index
    %6 = vector.load %arg6[%c0_6, %c0_7, %c0_8] : memref<1x32x32xbf16, #tpu.memory_space<vmem>>, vector<1x32x32xbf16>
    %7 = vector.shape_cast %6 : vector<1x32x32xbf16> to vector<32x32xbf16>
    %c0_9 = arith.constant 0 : index
    %c0_10 = arith.constant 0 : index
    %c0_11 = arith.constant 0 : index
    %8 = vector.load %arg7[%c0_9, %c0_10, %c0_11] : memref<1x32x64xbf16, #tpu.memory_space<vmem>>, vector<1x32x64xbf16>
    %9 = vector.shape_cast %8 : vector<1x32x64xbf16> to vector<32x64xbf16>
    %c0_12 = arith.constant 0 : index
    %c0_13 = arith.constant 0 : index
    %c0_14 = arith.constant 0 : index
    %10 = vector.load %arg8[%c0_12, %c0_13, %c0_14] : memref<1x64x32xbf16, #tpu.memory_space<vmem>>, vector<1x64x32xbf16>
    %11 = vector.shape_cast %10 : vector<1x64x32xbf16> to vector<64x32xbf16>
    %c0_15 = arith.constant 0 : index
    %c0_16 = arith.constant 0 : index
    %c0_17 = arith.constant 0 : index
    %12 = vector.load %arg9[%c0_15, %c0_16, %c0_17] : memref<1x8x96xf32, #tpu.memory_space<vmem>>, vector<1x8x96xf32>
    %13 = vector.shape_cast %12 : vector<1x8x96xf32> to vector<8x96xf32>
    %14 = vector.extract_strided_slice %13 {offsets = [0, 0], sizes = [1, 96], strides = [1, 1]} : vector<8x96xf32> to vector<1x96xf32>
    %15 = vector.extract_strided_slice %13 {offsets = [1, 0], sizes = [1, 32], strides = [1, 1]} : vector<8x96xf32> to vector<1x32xf32>
    %16 = vector.extract_strided_slice %13 {offsets = [2, 0], sizes = [1, 64], strides = [1, 1]} : vector<8x96xf32> to vector<1x64xf32>
    %17 = vector.extract_strided_slice %13 {offsets = [3, 0], sizes = [1, 32], strides = [1, 1]} : vector<8x96xf32> to vector<1x32xf32>
    %18 = vector.extract_strided_slice %13 {offsets = [4, 0], sizes = [1, 32], strides = [1, 1]} : vector<8x96xf32> to vector<1x32xf32>
    %19 = vector.extract_strided_slice %13 {offsets = [5, 0], sizes = [1, 32], strides = [1, 1]} : vector<8x96xf32> to vector<1x32xf32>
    %20 = vector.extract_strided_slice %13 {offsets = [6, 0], sizes = [1, 32], strides = [1, 1]} : vector<8x96xf32> to vector<1x32xf32>
    %21 = vector.extract_strided_slice %13 {offsets = [7, 0], sizes = [1, 32], strides = [1, 1]} : vector<8x96xf32> to vector<1x32xf32>
    %22 = vector.extract_strided_slice %3 {offsets = [0, 0, 0], sizes = [1, 12, 32], strides = [1, 1, 1]} : vector<2x12x32xf32> to vector<1x12x32xf32>
    %23 = vector.shape_cast %22 : vector<1x12x32xf32> to vector<12x32xf32>
    %24 = arith.truncf %23 : vector<12x32xf32> to vector<12x32xbf16>
    %cst = arith.constant dense<0.000000e+00> : vector<12x96xf32>
    %25 = tpu.matmul %24, %5, %cst {dimension_numbers = #tpu.dot_dimension_numbers<[1], [0], [0], [1], [0, 0, 1, 1], [], []>} : vector<12x32xbf16>, vector<32x96xbf16>, vector<12x96xf32> -> vector<12x96xf32>
    %26 = vector.broadcast %14 : vector<1x96xf32> to vector<12x96xf32>
    %27 = arith.addf %25, %26 : vector<12x96xf32>
    %28 = vector.extract_strided_slice %3 {offsets = [1, 0, 0], sizes = [1, 12, 32], strides = [1, 1, 1]} : vector<2x12x32xf32> to vector<1x12x32xf32>
    %29 = vector.shape_cast %28 : vector<1x12x32xf32> to vector<12x32xf32>
    %30 = arith.truncf %29 : vector<12x32xf32> to vector<12x32xbf16>
    %cst_18 = arith.constant dense<0.000000e+00> : vector<12x96xf32>
    %31 = tpu.matmul %30, %5, %cst_18 {dimension_numbers = #tpu.dot_dimension_numbers<[1], [0], [0], [1], [0, 0, 1, 1], [], []>} : vector<12x32xbf16>, vector<32x96xbf16>, vector<12x96xf32> -> vector<12x96xf32>
    %32 = vector.broadcast %14 : vector<1x96xf32> to vector<12x96xf32>
    %33 = arith.addf %31, %32 : vector<12x96xf32>
    %34 = vector.extract_strided_slice %27 {offsets = [0, 0], sizes = [12, 8], strides = [1, 1]} : vector<12x96xf32> to vector<12x8xf32>
    %35 = vector.extract_strided_slice %27 {offsets = [0, 8], sizes = [12, 8], strides = [1, 1]} : vector<12x96xf32> to vector<12x8xf32>
    %36 = vector.extract_strided_slice %27 {offsets = [0, 16], sizes = [12, 8], strides = [1, 1]} : vector<12x96xf32> to vector<12x8xf32>
    %37 = vector.extract_strided_slice %27 {offsets = [0, 24], sizes = [12, 8], strides = [1, 1]} : vector<12x96xf32> to vector<12x8xf32>
    %38 = vector.extract_strided_slice %33 {offsets = [0, 0], sizes = [12, 8], strides = [1, 1]} : vector<12x96xf32> to vector<12x8xf32>
    %39 = vector.extract_strided_slice %33 {offsets = [0, 8], sizes = [12, 8], strides = [1, 1]} : vector<12x96xf32> to vector<12x8xf32>
    %40 = vector.extract_strided_slice %33 {offsets = [0, 16], sizes = [12, 8], strides = [1, 1]} : vector<12x96xf32> to vector<12x8xf32>
    %41 = vector.extract_strided_slice %33 {offsets = [0, 24], sizes = [12, 8], strides = [1, 1]} : vector<12x96xf32> to vector<12x8xf32>
    %42 = vector.shape_cast %34 : vector<12x8xf32> to vector<1x12x8xf32>
    %43 = vector.shape_cast %35 : vector<12x8xf32> to vector<1x12x8xf32>
    %44 = vector.shape_cast %36 : vector<12x8xf32> to vector<1x12x8xf32>
    %45 = vector.shape_cast %37 : vector<12x8xf32> to vector<1x12x8xf32>
    %46 = vector.shape_cast %38 : vector<12x8xf32> to vector<1x12x8xf32>
    %47 = vector.shape_cast %39 : vector<12x8xf32> to vector<1x12x8xf32>
    %48 = vector.shape_cast %40 : vector<12x8xf32> to vector<1x12x8xf32>
    %49 = vector.shape_cast %41 : vector<12x8xf32> to vector<1x12x8xf32>
    %50 = tpu.concatenate %42, %43, %44, %45, %46, %47, %48, %49 in 0 : vector<1x12x8xf32>, vector<1x12x8xf32>, vector<1x12x8xf32>, vector<1x12x8xf32>, vector<1x12x8xf32>, vector<1x12x8xf32>, vector<1x12x8xf32>, vector<1x12x8xf32> -> vector<8x12x8xf32>
    %51 = vector.extract_strided_slice %27 {offsets = [0, 32], sizes = [12, 8], strides = [1, 1]} : vector<12x96xf32> to vector<12x8xf32>
    %52 = vector.extract_strided_slice %27 {offsets = [0, 40], sizes = [12, 8], strides = [1, 1]} : vector<12x96xf32> to vector<12x8xf32>
    %53 = vector.extract_strided_slice %27 {offsets = [0, 48], sizes = [12, 8], strides = [1, 1]} : vector<12x96xf32> to vector<12x8xf32>
    %54 = vector.extract_strided_slice %27 {offsets = [0, 56], sizes = [12, 8], strides = [1, 1]} : vector<12x96xf32> to vector<12x8xf32>
    %55 = vector.extract_strided_slice %33 {offsets = [0, 32], sizes = [12, 8], strides = [1, 1]} : vector<12x96xf32> to vector<12x8xf32>
    %56 = vector.extract_strided_slice %33 {offsets = [0, 40], sizes = [12, 8], strides = [1, 1]} : vector<12x96xf32> to vector<12x8xf32>
    %57 = vector.extract_strided_slice %33 {offsets = [0, 48], sizes = [12, 8], strides = [1, 1]} : vector<12x96xf32> to vector<12x8xf32>
    %58 = vector.extract_strided_slice %33 {offsets = [0, 56], sizes = [12, 8], strides = [1, 1]} : vector<12x96xf32> to vector<12x8xf32>
    %59 = vector.shape_cast %51 : vector<12x8xf32> to vector<1x12x8xf32>
    %60 = vector.shape_cast %52 : vector<12x8xf32> to vector<1x12x8xf32>
    %61 = vector.shape_cast %53 : vector<12x8xf32> to vector<1x12x8xf32>
    %62 = vector.shape_cast %54 : vector<12x8xf32> to vector<1x12x8xf32>
    %63 = vector.shape_cast %55 : vector<12x8xf32> to vector<1x12x8xf32>
    %64 = vector.shape_cast %56 : vector<12x8xf32> to vector<1x12x8xf32>
    %65 = vector.shape_cast %57 : vector<12x8xf32> to vector<1x12x8xf32>
    %66 = vector.shape_cast %58 : vector<12x8xf32> to vector<1x12x8xf32>
    %67 = tpu.concatenate %59, %60, %61, %62, %63, %64, %65, %66 in 0 : vector<1x12x8xf32>, vector<1x12x8xf32>, vector<1x12x8xf32>, vector<1x12x8xf32>, vector<1x12x8xf32>, vector<1x12x8xf32>, vector<1x12x8xf32>, vector<1x12x8xf32> -> vector<8x12x8xf32>
    %68 = vector.extract_strided_slice %27 {offsets = [0, 64], sizes = [12, 8], strides = [1, 1]} : vector<12x96xf32> to vector<12x8xf32>
    %69 = vector.extract_strided_slice %27 {offsets = [0, 72], sizes = [12, 8], strides = [1, 1]} : vector<12x96xf32> to vector<12x8xf32>
    %70 = vector.extract_strided_slice %27 {offsets = [0, 80], sizes = [12, 8], strides = [1, 1]} : vector<12x96xf32> to vector<12x8xf32>
    %71 = vector.extract_strided_slice %27 {offsets = [0, 88], sizes = [12, 8], strides = [1, 1]} : vector<12x96xf32> to vector<12x8xf32>
    %72 = vector.extract_strided_slice %33 {offsets = [0, 64], sizes = [12, 8], strides = [1, 1]} : vector<12x96xf32> to vector<12x8xf32>
    %73 = vector.extract_strided_slice %33 {offsets = [0, 72], sizes = [12, 8], strides = [1, 1]} : vector<12x96xf32> to vector<12x8xf32>
    %74 = vector.extract_strided_slice %33 {offsets = [0, 80], sizes = [12, 8], strides = [1, 1]} : vector<12x96xf32> to vector<12x8xf32>
    %75 = vector.extract_strided_slice %33 {offsets = [0, 88], sizes = [12, 8], strides = [1, 1]} : vector<12x96xf32> to vector<12x8xf32>
    %76 = vector.shape_cast %68 : vector<12x8xf32> to vector<1x12x8xf32>
    %77 = vector.shape_cast %69 : vector<12x8xf32> to vector<1x12x8xf32>
    %78 = vector.shape_cast %70 : vector<12x8xf32> to vector<1x12x8xf32>
    %79 = vector.shape_cast %71 : vector<12x8xf32> to vector<1x12x8xf32>
    %80 = vector.shape_cast %72 : vector<12x8xf32> to vector<1x12x8xf32>
    %81 = vector.shape_cast %73 : vector<12x8xf32> to vector<1x12x8xf32>
    %82 = vector.shape_cast %74 : vector<12x8xf32> to vector<1x12x8xf32>
    %83 = vector.shape_cast %75 : vector<12x8xf32> to vector<1x12x8xf32>
    %84 = tpu.concatenate %76, %77, %78, %79, %80, %81, %82, %83 in 0 : vector<1x12x8xf32>, vector<1x12x8xf32>, vector<1x12x8xf32>, vector<1x12x8xf32>, vector<1x12x8xf32>, vector<1x12x8xf32>, vector<1x12x8xf32>, vector<1x12x8xf32> -> vector<8x12x8xf32>
    %85 = tpu.iota {dimensions = array<i32: 1>} : vector<1x12xi32>
    %c0_19 = arith.constant 0 : index
    %86 = memref.load %arg1[%c0_19] : memref<2xi32, #tpu.memory_space<smem>>
    %c0_20 = arith.constant 0 : index
    %87 = memref.load %arg2[%c0_20] : memref<2xi32, #tpu.memory_space<smem>>
    %88 = vector.broadcast %86 : i32 to vector<1x12xi32>
    %89 = arith.cmpi slt, %85, %88 : vector<1x12xi32>
    %c8_i32 = arith.constant 8 : i32
    %90 = vector.broadcast %c8_i32 : i32 to vector<1x12xi32>
    %91 = arith.cmpi sge, %85, %90 : vector<1x12xi32>
    %c8_i32_21 = arith.constant 8 : i32
    %92 = arith.addi %c8_i32_21, %87 : i32
    %93 = vector.broadcast %92 : i32 to vector<1x12xi32>
    %94 = arith.cmpi slt, %85, %93 : vector<1x12xi32>
    %95 = arith.andi %91, %94 : vector<1x12xi1>
    %96 = arith.ori %89, %95 : vector<1x12xi1>
    %cst_22 = arith.constant 0.000000e+00 : f32
    %cst_23 = arith.constant -1.000000e+09 : f32
    %97 = vector.broadcast %cst_22 : f32 to vector<1x12xf32>
    %98 = vector.broadcast %cst_23 : f32 to vector<1x12xf32>
    %99 = arith.select %96, %97, %98 : vector<1x12xi1>, vector<1x12xf32>
    %c1 = arith.constant 1 : index
    %100 = memref.load %arg1[%c1] : memref<2xi32, #tpu.memory_space<smem>>
    %c1_24 = arith.constant 1 : index
    %101 = memref.load %arg2[%c1_24] : memref<2xi32, #tpu.memory_space<smem>>
    %102 = vector.broadcast %100 : i32 to vector<1x12xi32>
    %103 = arith.cmpi slt, %85, %102 : vector<1x12xi32>
    %c8_i32_25 = arith.constant 8 : i32
    %104 = vector.broadcast %c8_i32_25 : i32 to vector<1x12xi32>
    %105 = arith.cmpi sge, %85, %104 : vector<1x12xi32>
    %c8_i32_26 = arith.constant 8 : i32
    %106 = arith.addi %c8_i32_26, %101 : i32
    %107 = vector.broadcast %106 : i32 to vector<1x12xi32>
    %108 = arith.cmpi slt, %85, %107 : vector<1x12xi32>
    %109 = arith.andi %105, %108 : vector<1x12xi1>
    %110 = arith.ori %103, %109 : vector<1x12xi1>
    %cst_27 = arith.constant 0.000000e+00 : f32
    %cst_28 = arith.constant -1.000000e+09 : f32
    %111 = vector.broadcast %cst_27 : f32 to vector<1x12xf32>
    %112 = vector.broadcast %cst_28 : f32 to vector<1x12xf32>
    %113 = arith.select %110, %111, %112 : vector<1x12xi1>, vector<1x12xf32>
    %114 = vector.shape_cast %99 : vector<1x12xf32> to vector<1x1x12xf32>
    %115 = vector.shape_cast %99 : vector<1x12xf32> to vector<1x1x12xf32>
    %116 = vector.shape_cast %99 : vector<1x12xf32> to vector<1x1x12xf32>
    %117 = vector.shape_cast %99 : vector<1x12xf32> to vector<1x1x12xf32>
    %118 = vector.shape_cast %113 : vector<1x12xf32> to vector<1x1x12xf32>
    %119 = vector.shape_cast %113 : vector<1x12xf32> to vector<1x1x12xf32>
    %120 = vector.shape_cast %113 : vector<1x12xf32> to vector<1x1x12xf32>
    %121 = vector.shape_cast %113 : vector<1x12xf32> to vector<1x1x12xf32>
    %122 = tpu.concatenate %114, %115, %116, %117, %118, %119, %120, %121 in 0 : vector<1x1x12xf32>, vector<1x1x12xf32>, vector<1x1x12xf32>, vector<1x1x12xf32>, vector<1x1x12xf32>, vector<1x1x12xf32>, vector<1x1x12xf32>, vector<1x1x12xf32> -> vector<8x1x12xf32>
    %123 = arith.truncf %50 : vector<8x12x8xf32> to vector<8x12x8xbf16>
    %124 = arith.truncf %67 : vector<8x12x8xf32> to vector<8x12x8xbf16>
    "tpu.trace_start"() <{level = 10 : i32, message = "gqd,gkd->gqk"}> : () -> ()
    %cst_29 = arith.constant dense<0.000000e+00> : vector<8x12x12xf32>
    %125 = tpu.matmul %123, %124, %cst_29 {dimension_numbers = #tpu.dot_dimension_numbers<[2], [2], [1], [1], [0, 0, 0, 1, 1, 1], [0], [0]>} : vector<8x12x8xbf16>, vector<8x12x8xbf16>, vector<8x12x12xf32> -> vector<8x12x12xf32>
    "tpu.trace_stop"() : () -> ()
    %cst_30 = arith.constant 0.353553385 : f32
    %126 = vector.broadcast %cst_30 : f32 to vector<8x12x12xf32>
    %127 = arith.mulf %125, %126 : vector<8x12x12xf32>
    %128 = vector.broadcast %122 : vector<8x1x12xf32> to vector<8x12x12xf32>
    %129 = arith.addf %127, %128 : vector<8x12x12xf32>
    %cst_31 = arith.constant dense<0xFF800000> : vector<8x12xf32>
    %130 = vector.multi_reduction <maximumf>, %129, %cst_31 [2] : vector<8x12x12xf32> to vector<8x12xf32>
    %131 = vector.shape_cast %130 : vector<8x12xf32> to vector<8x12x1xf32>
    %132 = vector.broadcast %131 : vector<8x12x1xf32> to vector<8x12x12xf32>
    %133 = arith.subf %129, %132 : vector<8x12x12xf32>
    %134 = math.exp %133 : vector<8x12x12xf32>
    %cst_32 = arith.constant dense<0.000000e+00> : vector<8x12xf32>
    %135 = vector.multi_reduction <add>, %134, %cst_32 [2] : vector<8x12x12xf32> to vector<8x12xf32>
    %136 = vector.shape_cast %135 : vector<8x12xf32> to vector<8x12x1xf32>
    %137 = tpu.reciprocal %136 {approx = true} : vector<8x12x1xf32> -> vector<8x12x1xf32>
    %138 = vector.broadcast %137 : vector<8x12x1xf32> to vector<8x12x12xf32>
    %139 = arith.mulf %134, %138 : vector<8x12x12xf32>
    %140 = arith.truncf %139 : vector<8x12x12xf32> to vector<8x12x12xbf16>
    %141 = arith.truncf %84 : vector<8x12x8xf32> to vector<8x12x8xbf16>
    "tpu.trace_start"() <{level = 10 : i32, message = "gqk,gkd->gqd"}> : () -> ()
    %cst_33 = arith.constant dense<0.000000e+00> : vector<8x12x8xf32>
    %142 = tpu.matmul %140, %141, %cst_33 {dimension_numbers = #tpu.dot_dimension_numbers<[2], [1], [1], [2], [0, 0, 0, 1, 1, 2], [0], [0]>} : vector<8x12x12xbf16>, vector<8x12x8xbf16>, vector<8x12x8xf32> -> vector<8x12x8xf32>
    "tpu.trace_stop"() : () -> ()
    %143 = vector.extract_strided_slice %142 {offsets = [0, 0, 0], sizes = [1, 12, 8], strides = [1, 1, 1]} : vector<8x12x8xf32> to vector<1x12x8xf32>
    %144 = vector.shape_cast %143 : vector<1x12x8xf32> to vector<12x8xf32>
    %145 = vector.extract_strided_slice %142 {offsets = [1, 0, 0], sizes = [1, 12, 8], strides = [1, 1, 1]} : vector<8x12x8xf32> to vector<1x12x8xf32>
    %146 = vector.shape_cast %145 : vector<1x12x8xf32> to vector<12x8xf32>
    %147 = vector.extract_strided_slice %142 {offsets = [2, 0, 0], sizes = [1, 12, 8], strides = [1, 1, 1]} : vector<8x12x8xf32> to vector<1x12x8xf32>
    %148 = vector.shape_cast %147 : vector<1x12x8xf32> to vector<12x8xf32>
    %149 = vector.extract_strided_slice %142 {offsets = [3, 0, 0], sizes = [1, 12, 8], strides = [1, 1, 1]} : vector<8x12x8xf32> to vector<1x12x8xf32>
    %150 = vector.shape_cast %149 : vector<1x12x8xf32> to vector<12x8xf32>
    %151 = tpu.concatenate %144, %146, %148, %150 in 1 : vector<12x8xf32>, vector<12x8xf32>, vector<12x8xf32>, vector<12x8xf32> -> vector<12x32xf32>
    %152 = arith.truncf %151 : vector<12x32xf32> to vector<12x32xbf16>
    %cst_34 = arith.constant dense<0.000000e+00> : vector<12x32xf32>
    %153 = tpu.matmul %152, %7, %cst_34 {dimension_numbers = #tpu.dot_dimension_numbers<[1], [0], [0], [1], [0, 0, 1, 1], [], []>} : vector<12x32xbf16>, vector<32x32xbf16>, vector<12x32xf32> -> vector<12x32xf32>
    %154 = vector.broadcast %15 : vector<1x32xf32> to vector<12x32xf32>
    %155 = arith.addf %153, %154 : vector<12x32xf32>
    %156 = vector.extract_strided_slice %3 {offsets = [0, 0, 0], sizes = [1, 12, 32], strides = [1, 1, 1]} : vector<2x12x32xf32> to vector<1x12x32xf32>
    %157 = vector.shape_cast %156 : vector<1x12x32xf32> to vector<12x32xf32>
    %158 = arith.addf %157, %155 : vector<12x32xf32>
    %cst_35 = arith.constant dense<0.000000e+00> : vector<12xf32>
    %159 = vector.multi_reduction <add>, %158, %cst_35 [1] : vector<12x32xf32> to vector<12xf32>
    %160 = vector.shape_cast %159 : vector<12xf32> to vector<12x1xf32>
    %cst_36 = arith.constant 3.200000e+01 : f32
    %161 = vector.broadcast %cst_36 : f32 to vector<12x1xf32>
    %162 = arith.divf %160, %161 : vector<12x1xf32>
    %163 = vector.broadcast %162 : vector<12x1xf32> to vector<12x32xf32>
    %164 = arith.subf %158, %163 : vector<12x32xf32>
    %165 = arith.mulf %164, %164 : vector<12x32xf32>
    %cst_37 = arith.constant dense<0.000000e+00> : vector<12xf32>
    %166 = vector.multi_reduction <add>, %165, %cst_37 [1] : vector<12x32xf32> to vector<12xf32>
    %167 = vector.shape_cast %166 : vector<12xf32> to vector<12x1xf32>
    %cst_38 = arith.constant 3.200000e+01 : f32
    %168 = vector.broadcast %cst_38 : f32 to vector<12x1xf32>
    %169 = arith.divf %167, %168 : vector<12x1xf32>
    %170 = vector.broadcast %162 : vector<12x1xf32> to vector<12x32xf32>
    %171 = arith.subf %158, %170 : vector<12x32xf32>
    %cst_39 = arith.constant 9.99999974E-6 : f32
    %172 = vector.broadcast %cst_39 : f32 to vector<12x1xf32>
    %173 = arith.addf %169, %172 : vector<12x1xf32>
    %174 = math.rsqrt %173 : vector<12x1xf32>
    %175 = vector.broadcast %174 : vector<12x1xf32> to vector<12x32xf32>
    %176 = arith.mulf %171, %175 : vector<12x32xf32>
    %177 = vector.broadcast %18 : vector<1x32xf32> to vector<12x32xf32>
    %178 = arith.mulf %176, %177 : vector<12x32xf32>
    %179 = vector.broadcast %19 : vector<1x32xf32> to vector<12x32xf32>
    %180 = arith.addf %178, %179 : vector<12x32xf32>
    %181 = arith.truncf %180 : vector<12x32xf32> to vector<12x32xbf16>
    %cst_40 = arith.constant dense<0.000000e+00> : vector<12x64xf32>
    %182 = tpu.matmul %181, %9, %cst_40 {dimension_numbers = #tpu.dot_dimension_numbers<[1], [0], [0], [1], [0, 0, 1, 1], [], []>} : vector<12x32xbf16>, vector<32x64xbf16>, vector<12x64xf32> -> vector<12x64xf32>
    %183 = vector.broadcast %16 : vector<1x64xf32> to vector<12x64xf32>
    %184 = arith.addf %182, %183 : vector<12x64xf32>
    %cst_41 = arith.constant 0.000000e+00 : f32
    %185 = vector.broadcast %cst_41 : f32 to vector<12x64xf32>
    %186 = arith.maximumf %184, %185 : vector<12x64xf32>
    %187 = arith.truncf %186 : vector<12x64xf32> to vector<12x64xbf16>
    %cst_42 = arith.constant dense<0.000000e+00> : vector<12x32xf32>
    %188 = tpu.matmul %187, %11, %cst_42 {dimension_numbers = #tpu.dot_dimension_numbers<[1], [0], [0], [1], [0, 0, 1, 1], [], []>} : vector<12x64xbf16>, vector<64x32xbf16>, vector<12x32xf32> -> vector<12x32xf32>
    %189 = vector.broadcast %17 : vector<1x32xf32> to vector<12x32xf32>
    %190 = arith.addf %188, %189 : vector<12x32xf32>
    %191 = arith.addf %180, %190 : vector<12x32xf32>
    %cst_43 = arith.constant dense<0.000000e+00> : vector<12xf32>
    %192 = vector.multi_reduction <add>, %191, %cst_43 [1] : vector<12x32xf32> to vector<12xf32>
    %193 = vector.shape_cast %192 : vector<12xf32> to vector<12x1xf32>
    %cst_44 = arith.constant 3.200000e+01 : f32
    %194 = vector.broadcast %cst_44 : f32 to vector<12x1xf32>
    %195 = arith.divf %193, %194 : vector<12x1xf32>
    %196 = vector.broadcast %195 : vector<12x1xf32> to vector<12x32xf32>
    %197 = arith.subf %191, %196 : vector<12x32xf32>
    %198 = arith.mulf %197, %197 : vector<12x32xf32>
    %cst_45 = arith.constant dense<0.000000e+00> : vector<12xf32>
    %199 = vector.multi_reduction <add>, %198, %cst_45 [1] : vector<12x32xf32> to vector<12xf32>
    %200 = vector.shape_cast %199 : vector<12xf32> to vector<12x1xf32>
    %cst_46 = arith.constant 3.200000e+01 : f32
    %201 = vector.broadcast %cst_46 : f32 to vector<12x1xf32>
    %202 = arith.divf %200, %201 : vector<12x1xf32>
    %203 = vector.broadcast %195 : vector<12x1xf32> to vector<12x32xf32>
    %204 = arith.subf %191, %203 : vector<12x32xf32>
    %cst_47 = arith.constant 9.99999974E-6 : f32
    %205 = vector.broadcast %cst_47 : f32 to vector<12x1xf32>
    %206 = arith.addf %202, %205 : vector<12x1xf32>
    %207 = math.rsqrt %206 : vector<12x1xf32>
    %208 = vector.broadcast %207 : vector<12x1xf32> to vector<12x32xf32>
    %209 = arith.mulf %204, %208 : vector<12x32xf32>
    %210 = vector.broadcast %20 : vector<1x32xf32> to vector<12x32xf32>
    %211 = arith.mulf %209, %210 : vector<12x32xf32>
    %212 = vector.broadcast %21 : vector<1x32xf32> to vector<12x32xf32>
    %213 = arith.addf %211, %212 : vector<12x32xf32>
    %c0_48 = arith.constant 0 : index
    %c0_49 = arith.constant 0 : index
    %c0_50 = arith.constant 0 : index
    %214 = vector.load %arg10[%c0_48, %c0_49, %c0_50] : memref<2x12x32xf32, #tpu.memory_space<vmem>>, vector<1x12x32xf32>
    %215 = vector.shape_cast %214 : vector<1x12x32xf32> to vector<12x32xf32>
    %216 = vector.shape_cast %213 : vector<12x32xf32> to vector<1x12x32xf32>
    tpu.vector_store %arg10[%c0_48, %c0_49, %c0_50], %216 {strides = array<i32>} : memref<2x12x32xf32, #tpu.memory_space<vmem>>, vector<1x12x32xf32>,
    %217 = vector.extract_strided_slice %142 {offsets = [4, 0, 0], sizes = [1, 12, 8], strides = [1, 1, 1]} : vector<8x12x8xf32> to vector<1x12x8xf32>
    %218 = vector.shape_cast %217 : vector<1x12x8xf32> to vector<12x8xf32>
    %219 = vector.extract_strided_slice %142 {offsets = [5, 0, 0], sizes = [1, 12, 8], strides = [1, 1, 1]} : vector<8x12x8xf32> to vector<1x12x8xf32>
    %220 = vector.shape_cast %219 : vector<1x12x8xf32> to vector<12x8xf32>
    %221 = vector.extract_strided_slice %142 {offsets = [6, 0, 0], sizes = [1, 12, 8], strides = [1, 1, 1]} : vector<8x12x8xf32> to vector<1x12x8xf32>
    %222 = vector.shape_cast %221 : vector<1x12x8xf32> to vector<12x8xf32>
    %223 = vector.extract_strided_slice %142 {offsets = [7, 0, 0], sizes = [1, 12, 8], strides = [1, 1, 1]} : vector<8x12x8xf32> to vector<1x12x8xf32>
    %224 = vector.shape_cast %223 : vector<1x12x8xf32> to vector<12x8xf32>
    %225 = tpu.concatenate %218, %220, %222, %224 in 1 : vector<12x8xf32>, vector<12x8xf32>, vector<12x8xf32>, vector<12x8xf32> -> vector<12x32xf32>
    %226 = arith.truncf %225 : vector<12x32xf32> to vector<12x32xbf16>
    %cst_51 = arith.constant dense<0.000000e+00> : vector<12x32xf32>
    %227 = tpu.matmul %226, %7, %cst_51 {dimension_numbers = #tpu.dot_dimension_numbers<[1], [0], [0], [1], [0, 0, 1, 1], [], []>} : vector<12x32xbf16>, vector<32x32xbf16>, vector<12x32xf32> -> vector<12x32xf32>
    %228 = vector.broadcast %15 : vector<1x32xf32> to vector<12x32xf32>
    %229 = arith.addf %227, %228 : vector<12x32xf32>
    %230 = vector.extract_strided_slice %3 {offsets = [1, 0, 0], sizes = [1, 12, 32], strides = [1, 1, 1]} : vector<2x12x32xf32> to vector<1x12x32xf32>
    %231 = vector.shape_cast %230 : vector<1x12x32xf32> to vector<12x32xf32>
    %232 = arith.addf %231, %229 : vector<12x32xf32>
    %cst_52 = arith.constant dense<0.000000e+00> : vector<12xf32>
    %233 = vector.multi_reduction <add>, %232, %cst_52 [1] : vector<12x32xf32> to vector<12xf32>
    %234 = vector.shape_cast %233 : vector<12xf32> to vector<12x1xf32>
    %cst_53 = arith.constant 3.200000e+01 : f32
    %235 = vector.broadcast %cst_53 : f32 to vector<12x1xf32>
    %236 = arith.divf %234, %235 : vector<12x1xf32>
    %237 = vector.broadcast %236 : vector<12x1xf32> to vector<12x32xf32>
    %238 = arith.subf %232, %237 : vector<12x32xf32>
    %239 = arith.mulf %238, %238 : vector<12x32xf32>
    %cst_54 = arith.constant dense<0.000000e+00> : vector<12xf32>
    %240 = vector.multi_reduction <add>, %239, %cst_54 [1] : vector<12x32xf32> to vector<12xf32>
    %241 = vector.shape_cast %240 : vector<12xf32> to vector<12x1xf32>
    %cst_55 = arith.constant 3.200000e+01 : f32
    %242 = vector.broadcast %cst_55 : f32 to vector<12x1xf32>
    %243 = arith.divf %241, %242 : vector<12x1xf32>
    %244 = vector.broadcast %236 : vector<12x1xf32> to vector<12x32xf32>
    %245 = arith.subf %232, %244 : vector<12x32xf32>
    %cst_56 = arith.constant 9.99999974E-6 : f32
    %246 = vector.broadcast %cst_56 : f32 to vector<12x1xf32>
    %247 = arith.addf %243, %246 : vector<12x1xf32>
    %248 = math.rsqrt %247 : vector<12x1xf32>
    %249 = vector.broadcast %248 : vector<12x1xf32> to vector<12x32xf32>
    %250 = arith.mulf %245, %249 : vector<12x32xf32>
    %251 = vector.broadcast %18 : vector<1x32xf32> to vector<12x32xf32>
    %252 = arith.mulf %250, %251 : vector<12x32xf32>
    %253 = vector.broadcast %19 : vector<1x32xf32> to vector<12x32xf32>
    %254 = arith.addf %252, %253 : vector<12x32xf32>
    %255 = arith.truncf %254 : vector<12x32xf32> to vector<12x32xbf16>
    %cst_57 = arith.constant dense<0.000000e+00> : vector<12x64xf32>
    %256 = tpu.matmul %255, %9, %cst_57 {dimension_numbers = #tpu.dot_dimension_numbers<[1], [0], [0], [1], [0, 0, 1, 1], [], []>} : vector<12x32xbf16>, vector<32x64xbf16>, vector<12x64xf32> -> vector<12x64xf32>
    %257 = vector.broadcast %16 : vector<1x64xf32> to vector<12x64xf32>
    %258 = arith.addf %256, %257 : vector<12x64xf32>
    %cst_58 = arith.constant 0.000000e+00 : f32
    %259 = vector.broadcast %cst_58 : f32 to vector<12x64xf32>
    %260 = arith.maximumf %258, %259 : vector<12x64xf32>
    %261 = arith.truncf %260 : vector<12x64xf32> to vector<12x64xbf16>
    %cst_59 = arith.constant dense<0.000000e+00> : vector<12x32xf32>
    %262 = tpu.matmul %261, %11, %cst_59 {dimension_numbers = #tpu.dot_dimension_numbers<[1], [0], [0], [1], [0, 0, 1, 1], [], []>} : vector<12x64xbf16>, vector<64x32xbf16>, vector<12x32xf32> -> vector<12x32xf32>
    %263 = vector.broadcast %17 : vector<1x32xf32> to vector<12x32xf32>
    %264 = arith.addf %262, %263 : vector<12x32xf32>
    %265 = arith.addf %254, %264 : vector<12x32xf32>
    %cst_60 = arith.constant dense<0.000000e+00> : vector<12xf32>
    %266 = vector.multi_reduction <add>, %265, %cst_60 [1] : vector<12x32xf32> to vector<12xf32>
    %267 = vector.shape_cast %266 : vector<12xf32> to vector<12x1xf32>
    %cst_61 = arith.constant 3.200000e+01 : f32
    %268 = vector.broadcast %cst_61 : f32 to vector<12x1xf32>
    %269 = arith.divf %267, %268 : vector<12x1xf32>
    %270 = vector.broadcast %269 : vector<12x1xf32> to vector<12x32xf32>
    %271 = arith.subf %265, %270 : vector<12x32xf32>
    %272 = arith.mulf %271, %271 : vector<12x32xf32>
    %cst_62 = arith.constant dense<0.000000e+00> : vector<12xf32>
    %273 = vector.multi_reduction <add>, %272, %cst_62 [1] : vector<12x32xf32> to vector<12xf32>
    %274 = vector.shape_cast %273 : vector<12xf32> to vector<12x1xf32>
    %cst_63 = arith.constant 3.200000e+01 : f32
    %275 = vector.broadcast %cst_63 : f32 to vector<12x1xf32>
    %276 = arith.divf %274, %275 : vector<12x1xf32>
    %277 = vector.broadcast %269 : vector<12x1xf32> to vector<12x32xf32>
    %278 = arith.subf %265, %277 : vector<12x32xf32>
    %cst_64 = arith.constant 9.99999974E-6 : f32
    %279 = vector.broadcast %cst_64 : f32 to vector<12x1xf32>
    %280 = arith.addf %276, %279 : vector<12x1xf32>
    %281 = math.rsqrt %280 : vector<12x1xf32>
    %282 = vector.broadcast %281 : vector<12x1xf32> to vector<12x32xf32>
    %283 = arith.mulf %278, %282 : vector<12x32xf32>
    %284 = vector.broadcast %20 : vector<1x32xf32> to vector<12x32xf32>
    %285 = arith.mulf %283, %284 : vector<12x32xf32>
    %286 = vector.broadcast %21 : vector<1x32xf32> to vector<12x32xf32>
    %287 = arith.addf %285, %286 : vector<12x32xf32>
    %c1_65 = arith.constant 1 : index
    %c0_66 = arith.constant 0 : index
    %c0_67 = arith.constant 0 : index
    %288 = vector.load %arg10[%c1_65, %c0_66, %c0_67] : memref<2x12x32xf32, #tpu.memory_space<vmem>>, vector<1x12x32xf32>
    %289 = vector.shape_cast %288 : vector<1x12x32xf32> to vector<12x32xf32>
    %290 = vector.shape_cast %287 : vector<12x32xf32> to vector<1x12x32xf32>
    tpu.vector_store %arg10[%c1_65, %c0_66, %c0_67], %290 {strides = array<i32>} : memref<2x12x32xf32, #tpu.memory_space<vmem>>, vector<1x12x32xf32>,
    return
  }
  func.func @transform_0(%arg0: i32, %arg1: memref<2xi32, #tpu.memory_space<smem>>, %arg2: memref<2xi32, #tpu.memory_space<smem>>) -> (i32, i32, i32) {
    %c0_i32 = arith.constant 0 : i32
    %c0_i32_0 = arith.constant 0 : i32
    %c0_i32_1 = arith.constant 0 : i32
    %c0_i32_2 = arith.constant 0 : i32
    return %c0_i32, %c0_i32_0, %c0_i32_1 : i32, i32, i32
  }
  func.func @transform_1(%arg0: i32, %arg1: memref<2xi32, #tpu.memory_space<smem>>, %arg2: memref<2xi32, #tpu.memory_space<smem>>) -> (i32, i32) {
    %c0_i32 = arith.constant 0 : i32
    %c0_i32_0 = arith.constant 0 : i32
    %c0_i32_1 = arith.constant 0 : i32
    return %c0_i32, %c0_i32_0 : i32, i32
  }
  func.func @transform_2(%arg0: i32, %arg1: memref<2xi32, #tpu.memory_space<smem>>, %arg2: memref<2xi32, #tpu.memory_space<smem>>) -> (i32, i32, i32) {
    %c0_i32 = arith.constant 0 : i32
    %c0_i32_0 = arith.constant 0 : i32
    %c0_i32_1 = arith.constant 0 : i32
    return %arg0, %c0_i32, %c0_i32_0 : i32, i32, i32
  }
  func.func @transform_3(%arg0: i32, %arg1: memref<2xi32, #tpu.memory_space<smem>>, %arg2: memref<2xi32, #tpu.memory_space<smem>>) -> (i32, i32, i32) {
    %c0_i32 = arith.constant 0 : i32
    %c0_i32_0 = arith.constant 0 : i32
    %c0_i32_1 = arith.constant 0 : i32
    return %arg0, %c0_i32, %c0_i32_0 : i32, i32, i32
  }
  func.func @transform_4(%arg0: i32, %arg1: memref<2xi32, #tpu.memory_space<smem>>, %arg2: memref<2xi32, #tpu.memory_space<smem>>) -> (i32, i32, i32) {
    %c0_i32 = arith.constant 0 : i32
    %c0_i32_0 = arith.constant 0 : i32
    %c0_i32_1 = arith.constant 0 : i32
    return %arg0, %c0_i32, %c0_i32_0 : i32, i32, i32
  }
  func.func @transform_5(%arg0: i32, %arg1: memref<2xi32, #tpu.memory_space<smem>>, %arg2: memref<2xi32, #tpu.memory_space<smem>>) -> (i32, i32, i32) {
    %c0_i32 = arith.constant 0 : i32
    %c0_i32_0 = arith.constant 0 : i32
    %c0_i32_1 = arith.constant 0 : i32
    return %arg0, %c0_i32, %c0_i32_0 : i32, i32, i32
  }
  func.func @transform_6(%arg0: i32, %arg1: memref<2xi32, #tpu.memory_space<smem>>, %arg2: memref<2xi32, #tpu.memory_space<smem>>) -> (i32, i32, i32) {
    %c0_i32 = arith.constant 0 : i32
    %c0_i32_0 = arith.constant 0 : i32
    %c0_i32_1 = arith.constant 0 : i32
    return %arg0, %c0_i32, %c0_i32_0 : i32, i32, i32
  }
  func.func @transform_7(%arg0: i32, %arg1: memref<2xi32, #tpu.memory_space<smem>>, %arg2: memref<2xi32, #tpu.memory_space<smem>>) -> (i32, i32, i32) {
    %c0_i32 = arith.constant 0 : i32
    %c0_i32_0 = arith.constant 0 : i32
    %c0_i32_1 = arith.constant 0 : i32
    %c0_i32_2 = arith.constant 0 : i32
    return %c0_i32, %c0_i32_0, %c0_i32_1 : i32, i32, i32
  }
}

</mosaic_0001>

<llo_original>
// kernel: tpu_custom_call.1
$region0: #{tpu_custom_call.1}
  #allocation0 [shape = 'u32[]', space=smem, size = 0x4, offset = 0x4, fixed_abs, tag = 'smem constant byte address 0x4 - core index']
  #allocation1 [shape = 'u32[72,128]{1,0:T(1,128)}', space=vmem, size = 0x9000, scoped, tag = 'internal scratch']
  #allocation2 [shape = 's32[1]{0}', space=sflag, size = 0x4, scoped, tag = 'scoped memory for tpu_custom_call.1']
  #allocation3 [shape = 'u8[512]{0}', space=smem, size = 0x200, scoped, tag = 'prefetched SMEM operand 0']
  #allocation4 [shape = 'u8[512]{0}', space=smem, size = 0x200, scoped, tag = 'prefetched SMEM operand 1']
  %s0 = inlined_call_operand.vmem [shape: s32[2], index: 0, kind: input, shape index: {}]
  %s1 = inlined_call_operand.vmem [shape: s32[2], index: 1, kind: input, shape index: {}]
  %s2 = inlined_call_operand.vmem [shape: f32[2,12,32], index: 2, kind: input, shape index: {}]
  %s3 = inlined_call_operand.vmem [shape: f32[12,32], index: 3, kind: input, shape index: {}]
  %s4 = inlined_call_operand.vmem [shape: bf16[2,32,96], index: 4, kind: input, shape index: {}]
  %s5 = inlined_call_operand.vmem [shape: bf16[2,32,32], index: 5, kind: input, shape index: {}]
  %s6 = inlined_call_operand.vmem [shape: bf16[2,32,64], index: 6, kind: input, shape index: {}]
  %s7 = inlined_call_operand.vmem [shape: bf16[2,64,32], index: 7, kind: input, shape index: {}]
  %s8 = inlined_call_operand.hbm [shape: f32[2,8,96], index: 8, kind: input, shape index: {}]
  %s9 = inlined_call_operand.vmem [shape: f32[2,12,32], index: 9, kind: output, shape index: {}]
  %s10 = sld [smem:[#allocation0]]
  $region69: #{tpu_custom_call.1} parent=0
    _
  %s12 = ssub.s32 1, %s10
  %s13 = scalar_select 0, %s12, %s10
  %s15 = sshll.u32 %s0, 4
  %s16 = int_to_ptr.vmem [resolvable:$true] %s15
  %18 = dma.vmem_to_smem %s16, 16, [#allocation3], [#allocation2]
  %s20 = sshll.u32 %s1, 4
  %s21 = int_to_ptr.vmem [resolvable:$true] %s20
  %23 = dma.vmem_to_smem %s21, 16, [#allocation4], [#allocation2]
  %25 = dma.done [#allocation2], 32
  %26 = sfence
  $region1: #{tpu_custom_call.1} parent=0
    #allocation5 [shape = 'u8[8192]{0}', space=vmem, size = 0x2000, scoped, tag = 'input window, operand 8']
    #allocation6 [shape = 's32[2]{0}', space=sflag, size = 0x8, scoped, tag = 'scoped memory for tpu_custom_call.1']
    %27 = vsyncpa [#allocation6], 0
    %s28 = scalar_lea.sflag [#allocation6], 1
    %29 = vsyncpa %s28, 0
    loop: start=0, step=1, limit=4
    $region2: #{tpu_custom_call.1} parent=1 // loop_pre_header
      _
    $region3: #{tpu_custom_call.1} parent=1 // loop_header
      %s31 = sphi 0, %s35
      %p32 = scmp.ge.s32.totalorder %s31, 4
      %s39 = sphi 0, %s39
      %s41 = sphi 0, %s39
      %s42 = sphi 0, %s41
      %s56 = sphi 0, %s42
      %s60 = sphi 0, %s60
      %s62 = sphi 0, %s60
      %s63 = sphi 0, %s62
      %s77 = sphi 0, %s63
      %s83 = sphi 0, %s85
      %s86 = sphi 0, %s83
      %s87 = sphi 0, %s86
      %s103 = sphi 0, %s87
      %s109 = sphi 0, %s111
      %s112 = sphi 0, %s109
      %s113 = sphi 0, %s112
      %s129 = sphi 0, %s113
      %s135 = sphi 0, %s137
      %s138 = sphi 0, %s135
      %s139 = sphi 0, %s138
      %s155 = sphi 0, %s139
      %s161 = sphi 0, %s163
      %s164 = sphi 0, %s161
      %s165 = sphi 0, %s164
      %s181 = sphi 0, %s165
      %s187 = sphi 0, %s189
      %s190 = sphi 0, %s187
      %s191 = sphi 0, %s190
      %s207 = sphi 0, %s191
      %s211 = sphi 0, %s211
      %s213 = sphi 0, %s211
      %s214 = sphi 0, %s213
      %s228 = sphi 0, %s214
    $region4: #{tpu_custom_call.1} parent=1 // loop_header_branch
      %34 = sbr.rel (%p32) target = $region8
    $region5: #{tpu_custom_call.1} parent=1 // loop_body
      %s36 = ssub.s32 %s31, 1
      %s37 = ssub.s32 %s31, 2
      %s38 = sadd.s32 %s31, 1
      %s40 = sadd.s32 %s39, 1
      %p43 = scmp.eq.s32.totalorder %s31, 1
      %p44 = scmp.ne.s32.totalorder %s39, %s41
      %p45 = scmp.eq.s32.totalorder %s31, 0
      %p46 = por %p44, %p45
      %p47 = scmp.ne.s32.totalorder %s39, %s41
      %p48 = scmp.eq.s32.totalorder %s36, 1
      %p49 = por %p47, %p48
      %p50 = scmp.ne.s32.totalorder %s41, %s42
      %p51 = scmp.eq.s32.totalorder %s36, 0
      %p52 = por %p50, %p51
      %p53 = scmp.ne.s32.totalorder %s41, %s42
      %p54 = scmp.eq.s32.totalorder %s37, 1
      %p55 = por %p53, %p54
      %p57 = scmp.ne.s32.totalorder %s42, %s56
      %p58 = scmp.eq.s32.totalorder %s37, 0
      %p59 = por %p57, %p58
      %s61 = sadd.s32 %s60, 1
      %p64 = scmp.eq.s32.totalorder %s31, 1
      %p65 = scmp.ne.s32.totalorder %s60, %s62
      %p66 = scmp.eq.s32.totalorder %s31, 0
      %p67 = por %p65, %p66
      %p68 = scmp.ne.s32.totalorder %s60, %s62
      %p69 = scmp.eq.s32.totalorder %s36, 1
      %p70 = por %p68, %p69
      %p71 = scmp.ne.s32.totalorder %s62, %s63
      %p72 = scmp.eq.s32.totalorder %s36, 0
      %p73 = por %p71, %p72
      %p74 = scmp.ne.s32.totalorder %s62, %s63
      %p75 = scmp.eq.s32.totalorder %s37, 1
      %p76 = por %p74, %p75
      %p78 = scmp.ne.s32.totalorder %s63, %s77
      %p79 = scmp.eq.s32.totalorder %s37, 0
      %p80 = por %p78, %p79
      %s81 = ssub.s32 %s31, %s38
      %p82 = scmp.eq.s32.totalorder %s81, 0
      %s84 = sadd.s32 %s83, 1
      %s85 = scalar_select %p82, %s83, %s84
      %p88 = pneg %p82
      %p89 = scmp.eq.s32.totalorder %s31, 1
      %p90 = por %p88, %p89
      %p91 = scmp.ne.s32.totalorder %s83, %s86
      %p92 = scmp.eq.s32.totalorder %s31, 0
      %p93 = por %p91, %p92
      %p94 = scmp.ne.s32.totalorder %s83, %s86
      %p95 = scmp.eq.s32.totalorder %s36, 1
      %p96 = por %p94, %p95
      %p97 = scmp.ne.s32.totalorder %s86, %s87
      %p98 = scmp.eq.s32.totalorder %s36, 0
      %p99 = por %p97, %p98
      %p100 = scmp.ne.s32.totalorder %s86, %s87
      %p101 = scmp.eq.s32.totalorder %s37, 1
      %p102 = por %p100, %p101
      %p104 = scmp.ne.s32.totalorder %s87, %s103
      %p105 = scmp.eq.s32.totalorder %s37, 0
      %p106 = por %p104, %p105
      %s107 = ssub.s32 %s31, %s38
      %p108 = scmp.eq.s32.totalorder %s107, 0
      %s110 = sadd.s32 %s109, 1
      %s111 = scalar_select %p108, %s109, %s110
      %p114 = pneg %p108
      %p115 = scmp.eq.s32.totalorder %s31, 1
      %p116 = por %p114, %p115
      %p117 = scmp.ne.s32.totalorder %s109, %s112
      %p118 = scmp.eq.s32.totalorder %s31, 0
      %p119 = por %p117, %p118
      %p120 = scmp.ne.s32.totalorder %s109, %s112
      %p121 = scmp.eq.s32.totalorder %s36, 1
      %p122 = por %p120, %p121
      %p123 = scmp.ne.s32.totalorder %s112, %s113
      %p124 = scmp.eq.s32.totalorder %s36, 0
      %p125 = por %p123, %p124
      %p126 = scmp.ne.s32.totalorder %s112, %s113
      %p127 = scmp.eq.s32.totalorder %s37, 1
      %p128 = por %p126, %p127
      %p130 = scmp.ne.s32.totalorder %s113, %s129
      %p131 = scmp.eq.s32.totalorder %s37, 0
      %p132 = por %p130, %p131
      %s133 = ssub.s32 %s31, %s38
      %p134 = scmp.eq.s32.totalorder %s133, 0
      %s136 = sadd.s32 %s135, 1
      %s137 = scalar_select %p134, %s135, %s136
      %p140 = pneg %p134
      %p141 = scmp.eq.s32.totalorder %s31, 1
      %p142 = por %p140, %p141
      %p143 = scmp.ne.s32.totalorder %s135, %s138
      %p144 = scmp.eq.s32.totalorder %s31, 0
      %p145 = por %p143, %p144
      %p146 = scmp.ne.s32.totalorder %s135, %s138
      %p147 = scmp.eq.s32.totalorder %s36, 1
      %p148 = por %p146, %p147
      %p149 = scmp.ne.s32.totalorder %s138, %s139
      %p150 = scmp.eq.s32.totalorder %s36, 0
      %p151 = por %p149, %p150
      %p152 = scmp.ne.s32.totalorder %s138, %s139
      %p153 = scmp.eq.s32.totalorder %s37, 1
      %p154 = por %p152, %p153
      %p156 = scmp.ne.s32.totalorder %s139, %s155
      %p157 = scmp.eq.s32.totalorder %s37, 0
      %p158 = por %p156, %p157
      %s159 = ssub.s32 %s31, %s38
      %p160 = scmp.eq.s32.totalorder %s159, 0
      %s162 = sadd.s32 %s161, 1
      %s163 = scalar_select %p160, %s161, %s162
      %p166 = pneg %p160
      %p167 = scmp.eq.s32.totalorder %s31, 1
      %p168 = por %p166, %p167
      %p169 = scmp.ne.s32.totalorder %s161, %s164
      %p170 = scmp.eq.s32.totalorder %s31, 0
      %p171 = por %p169, %p170
      %p172 = scmp.ne.s32.totalorder %s161, %s164
      %p173 = scmp.eq.s32.totalorder %s36, 1
      %p174 = por %p172, %p173
      %p175 = scmp.ne.s32.totalorder %s164, %s165
      %p176 = scmp.eq.s32.totalorder %s36, 0
      %p177 = por %p175, %p176
      %p178 = scmp.ne.s32.totalorder %s164, %s165
      %p179 = scmp.eq.s32.totalorder %s37, 1
      %p180 = por %p178, %p179
      %p182 = scmp.ne.s32.totalorder %s165, %s181
      %p183 = scmp.eq.s32.totalorder %s37, 0
      %p184 = por %p182, %p183
      %s185 = ssub.s32 %s31, %s38
      %p186 = scmp.eq.s32.totalorder %s185, 0
      %s188 = sadd.s32 %s187, 1
      %s189 = scalar_select %p186, %s187, %s188
      %p192 = pneg %p186
      %p193 = scmp.eq.s32.totalorder %s31, 1
      %p194 = por %p192, %p193
      %p195 = scmp.ne.s32.totalorder %s187, %s190
      %p196 = scmp.eq.s32.totalorder %s31, 0
      %p197 = por %p195, %p196
      %p198 = scmp.ne.s32.totalorder %s187, %s190
      %p199 = scmp.eq.s32.totalorder %s36, 1
      %p200 = por %p198, %p199
      %p201 = scmp.ne.s32.totalorder %s190, %s191
      %p202 = scmp.eq.s32.totalorder %s36, 0
      %p203 = por %p201, %p202
      %p204 = scmp.ne.s32.totalorder %s190, %s191
      %p205 = scmp.eq.s32.totalorder %s37, 1
      %p206 = por %p204, %p205
      %p208 = scmp.ne.s32.totalorder %s191, %s207
      %p209 = scmp.eq.s32.totalorder %s37, 0
      %p210 = por %p208, %p209
      %s212 = sadd.s32 %s211, 1
      %p215 = scmp.eq.s32.totalorder %s31, 1
      %p216 = scmp.ne.s32.totalorder %s211, %s213
      %p217 = scmp.eq.s32.totalorder %s31, 0
      %p218 = por %p216, %p217
      %p219 = scmp.ne.s32.totalorder %s211, %s213
      %p220 = scmp.eq.s32.totalorder %s36, 1
      %p221 = por %p219, %p220
      %p222 = scmp.ne.s32.totalorder %s213, %s214
      %p223 = scmp.eq.s32.totalorder %s36, 0
      %p224 = por %p222, %p223
      %p225 = scmp.ne.s32.totalorder %s213, %s214
      %p226 = scmp.eq.s32.totalorder %s37, 1
      %p227 = por %p225, %p226
      %p229 = scmp.ne.s32.totalorder %s214, %s228
      %p230 = scmp.eq.s32.totalorder %s37, 0
      %p231 = por %p229, %p230
      %p232 = scmp.le.s32.totalorder 1, %s31
      %p233 = scmp.lt.s32.totalorder %s31, 3
      %p234 = pnand %p232, %p233
      %p235 = pneg %p234
      // Predicated region
      $region9: #{tpu_custom_call.1} parent=5 // pred_check
        _
      $region10: #{tpu_custom_call.1} parent=5 // pred_check_branch
        %237 = sbr.rel (%p234) target = $region12
      $region11: #{tpu_custom_call.1} parent=5 // pred_region
        %s238 = ssub.s32 %s31, 1
        // Predicated region
        $region13: #{tpu_custom_call.1} parent=11 // pred_check
          %p239 = pneg %p52
        $region14: #{tpu_custom_call.1} parent=11 // pred_check_branch
          %241 = sbr.rel (%p239) target = $region16
        $region15: #{tpu_custom_call.1} parent=11 // pred_region
          _
        $region16: #{tpu_custom_call.1} parent=11 // pred_fallthru
          _
        // Predicated region
        $region17: #{tpu_custom_call.1} parent=11 // pred_check
          %p242 = pneg %p73
        $region18: #{tpu_custom_call.1} parent=11 // pred_check_branch
          %244 = sbr.rel (%p242) target = $region20
        $region19: #{tpu_custom_call.1} parent=11 // pred_region
          _
        $region20: #{tpu_custom_call.1} parent=11 // pred_fallthru
          _
      $region12: #{tpu_custom_call.1} parent=5 // pred_fallthru
        _
      %p245 = scmp.lt.s32.totalorder %s31, 2
      // Predicated region
      $region21: #{tpu_custom_call.1} parent=5 // pred_check
        %p246 = pneg %p245
      $region22: #{tpu_custom_call.1} parent=5 // pred_check_branch
        %248 = sbr.rel (%p246) target = $region24
      $region23: #{tpu_custom_call.1} parent=5 // pred_region
        // Predicated region
        $region25: #{tpu_custom_call.1} parent=23 // pred_check
          %p249 = pneg %p93
        $region26: #{tpu_custom_call.1} parent=23 // pred_check_branch
          %251 = sbr.rel (%p249) target = $region28
        $region27: #{tpu_custom_call.1} parent=23 // pred_region
          %p252 = scmp.lt.s32.totalorder %s31, 1
          %s253 = scalar_select %p252, %s31, 1
          %s254 = smul.addr %s253, 4
          %s255 = smul.addr %s254, 4
          %s256 = scalar_lea.vmem %s4, %s255
        $region28: #{tpu_custom_call.1} parent=23 // pred_fallthru
          _
        // Predicated region
        $region29: #{tpu_custom_call.1} parent=23 // pred_check
          %p257 = pneg %p119
        $region30: #{tpu_custom_call.1} parent=23 // pred_check_branch
          %259 = sbr.rel (%p257) target = $region32
        $region31: #{tpu_custom_call.1} parent=23 // pred_region
          %p260 = scmp.lt.s32.totalorder %s31, 1
          %s261 = scalar_select %p260, %s31, 1
          %s262 = smul.addr %s261, 4
          %s263 = smul.addr %s262, 4
          %s264 = scalar_lea.vmem %s5, %s263
        $region32: #{tpu_custom_call.1} parent=23 // pred_fallthru
          _
        // Predicated region
        $region33: #{tpu_custom_call.1} parent=23 // pred_check
          %p265 = pneg %p145
        $region34: #{tpu_custom_call.1} parent=23 // pred_check_branch
          %267 = sbr.rel (%p265) target = $region36
        $region35: #{tpu_custom_call.1} parent=23 // pred_region
          %p268 = scmp.lt.s32.totalorder %s31, 1
          %s269 = scalar_select %p268, %s31, 1
          %s270 = smul.addr %s269, 4
          %s271 = smul.addr %s270, 4
          %s272 = scalar_lea.vmem %s6, %s271
        $region36: #{tpu_custom_call.1} parent=23 // pred_fallthru
          _
        // Predicated region
        $region37: #{tpu_custom_call.1} parent=23 // pred_check
          %p273 = pneg %p171
        $region38: #{tpu_custom_call.1} parent=23 // pred_check_branch
          %275 = sbr.rel (%p273) target = $region40
        $region39: #{tpu_custom_call.1} parent=23 // pred_region
          %p276 = scmp.lt.s32.totalorder %s31, 1
          %s277 = scalar_select %p276, %s31, 1
          %s278 = smul.addr %s277, 8
          %s279 = smul.addr %s278, 4
          %s280 = scalar_lea.vmem %s7, %s279
        $region40: #{tpu_custom_call.1} parent=23 // pred_fallthru
          _
        // Predicated region
        $region41: #{tpu_custom_call.1} parent=23 // pred_check
          %p281 = pneg %p197
        $region42: #{tpu_custom_call.1} parent=23 // pred_check_branch
          %283 = sbr.rel (%p281) target = $region44
        $region43: #{tpu_custom_call.1} parent=23 // pred_region
          %s284 = sand.u32 %s187, 1
          %s285 = scalar_lea.sflag [#allocation6], %s284
          %s286 = sand.u32 %s187, 1
          %s287 = smul.addr %s286, 8
          %s288 = scalar_lea.vmem [#allocation5], %s287
          %290 = vsyncadd %s285, 0
          %s291 = smul.addr %s31, 8
          %s292 = scalar_lea.hbm %s8, %s291
          %s294 = sshll.u32 %s292, 4
          %s295 = int_to_ptr.hbm [resolvable:$true] %s294
          %s296 = sshll.u32 %s288, 4
          %s297 = int_to_ptr.vmem [resolvable:$true] %s296
          %299 = dma.hbm_to_vmem [thread:$0]  %s295, 128, %s297, %s285
        $region44: #{tpu_custom_call.1} parent=23 // pred_fallthru
          _
      $region24: #{tpu_custom_call.1} parent=5 // pred_fallthru
        _
      %p300 = scmp.le.s32.totalorder 1, %s31
      %p301 = scmp.lt.s32.totalorder %s31, 3
      %p302 = pnand %p300, %p301
      %p303 = pneg %p302
      // Predicated region
      $region45: #{tpu_custom_call.1} parent=5 // pred_check
        _
      $region46: #{tpu_custom_call.1} parent=5 // pred_check_branch
        %305 = sbr.rel (%p302) target = $region48
      $region47: #{tpu_custom_call.1} parent=5 // pred_region
        %s306 = ssub.s32 %s31, 1
        %s307 = sand.u32 %s190, 1
        %s308 = scalar_lea.sflag [#allocation6], %s307
        %s309 = sand.u32 %s190, 1
        %s310 = smul.addr %s309, 8
        %s311 = scalar_lea.vmem [#allocation5], %s310
        // Predicated region
        $region49: #{tpu_custom_call.1} parent=47 // pred_check
          %p312 = pneg %p203
        $region50: #{tpu_custom_call.1} parent=47 // pred_check_branch
          %314 = sbr.rel (%p312) target = $region52
        $region51: #{tpu_custom_call.1} parent=47 // pred_region
          %316 = dma.done %s308, 128
        $region52: #{tpu_custom_call.1} parent=47 // pred_fallthru
          _
        %p317 = pneg %p52
        %p318 = pneg %p49
        %p319 = pneg %p73
        %p320 = pneg %p70
        %p321 = scmp.lt.s32.totalorder %s36, 1
        %s322 = scalar_select %p321, %s36, 1
        %s323 = smul.addr %s322, 4
        %s324 = smul.addr %s323, 4
        %s325 = scalar_lea.vmem %s4, %s324
        %p326 = pneg %p99
        %p327 = pneg %p96
        %p328 = scmp.lt.s32.totalorder %s36, 1
        %s329 = scalar_select %p328, %s36, 1
        %s330 = smul.addr %s329, 4
        %s331 = smul.addr %s330, 4
        %s332 = scalar_lea.vmem %s5, %s331
        %p333 = pneg %p125
        %p334 = pneg %p122
        %p335 = scmp.lt.s32.totalorder %s36, 1
        %s336 = scalar_select %p335, %s36, 1
        %s337 = smul.addr %s336, 4
        %s338 = smul.addr %s337, 4
        %s339 = scalar_lea.vmem %s6, %s338
        %p340 = pneg %p151
        %p341 = pneg %p148
        %p342 = scmp.lt.s32.totalorder %s36, 1
        %s343 = scalar_select %p342, %s36, 1
        %s344 = smul.addr %s343, 8
        %s345 = smul.addr %s344, 4
        %s346 = scalar_lea.vmem %s7, %s345
        %p347 = pneg %p177
        %p348 = pneg %p174
        %s349 = sand.u32 %s190, 1
        %s350 = scalar_lea.sflag [#allocation6], %s349
        %s351 = sand.u32 %s190, 1
        %s352 = smul.addr %s351, 8
        %s353 = scalar_lea.vmem [#allocation5], %s352
        %p354 = pneg %p203
        %p355 = pneg %p200
        %p356 = pneg %p224
        %p357 = pneg %p221
        %p358 = scmp.lt.s32.totalorder %s36, 1
        %s359 = scalar_select %p358, %s36, 1
        %s360 = smul.addr %s359, 4
        %s361 = smul.addr %s360, 4
        %s362 = scalar_lea.vmem %s4, %s361
        %p363 = scmp.lt.s32.totalorder %s36, 1
        %s364 = scalar_select %p363, %s36, 1
        %s365 = smul.addr %s364, 4
        %s366 = smul.addr %s365, 4
        %s367 = scalar_lea.vmem %s5, %s366
        %p368 = scmp.lt.s32.totalorder %s36, 1
        %s369 = scalar_select %p368, %s36, 1
        %s370 = smul.addr %s369, 4
        %s371 = smul.addr %s370, 4
        %s372 = scalar_lea.vmem %s6, %s371
        %p373 = scmp.lt.s32.totalorder %s36, 1
        %s374 = scalar_select %p373, %s36, 1
        %s375 = smul.addr %s374, 8
        %s376 = smul.addr %s375, 4
        %s377 = scalar_lea.vmem %s7, %s376
        %p379 = scmp.eq.s32.totalorder %s36, 0
        // Predicated region
        $region53: #{tpu_custom_call.1} parent=47 // pred_check
          %p380 = pneg %p379
        $region54: #{tpu_custom_call.1} parent=47 // pred_check_branch
          %382 = sbr.rel (%p380) target = $region56
        $region55: #{tpu_custom_call.1} parent=47 // pred_region
          %v383 = vld [vmem:[%s2] sm:$0xff]
          %v384 = vld [vmem:[%s2 + $0x8] sm:$0xf]
          %v385 = vld [vmem:[%s2 + $0x10] sm:$0xff]
          %v386 = vld [vmem:[%s2 + $0x18] sm:$0xf]
          %v387 = vld [vmem:[%s3] sm:$0xff]
          %v388 = vld [vmem:[%s3 + $0x8] sm:$0xf]
          %v389 = vadd.f32 %v383, %v387
          %v390 = vadd.f32 %v384, %v388
          %v391 = vadd.f32 %v385, %v387
          %v392 = vadd.f32 %v386, %v388
          %vm393 = vcmask 261120
          %394 = vst.msk [vmem:[%s9] sm:$0xff] %vm393, %v389
          %vm395 = vcmask 257024
          %396 = vst.msk [vmem:[%s9 + $0x8] sm:$0xf] %vm395, %v390
          %397 = vst.msk [vmem:[%s9 + $0x10] sm:$0xff] %vm393, %v391
          %398 = vst.msk [vmem:[%s9 + $0x18] sm:$0xf] %vm395, %v392
        $region56: #{tpu_custom_call.1} parent=47 // pred_fallthru
          _
        %v399 = vld [vmem:[%s9] sm:$0xff]
        %v400 = vld [vmem:[%s9 + $0x8] sm:$0xf]
        %v401 = vld [vmem:[%s9 + $0x10] sm:$0xff]
        %v402 = vld [vmem:[%s9 + $0x18] sm:$0xf]
        %v403 = vld [vmem:[%s362] sm:$0xf]
        %v404 = vld [vmem:[%s362 + $0x4] sm:$0xf]
        %v405 = vld [vmem:[%s362 + $0x8] sm:$0xf]
        %v406 = vld [vmem:[%s362 + $0xc] sm:$0xf]
        %v407 = vld [vmem:[%s367] sm:$0xf]
        %v408 = vld [vmem:[%s367 + $0x4] sm:$0xf]
        %v409 = vld [vmem:[%s367 + $0x8] sm:$0xf]
        %v410 = vld [vmem:[%s367 + $0xc] sm:$0xf]
        %v411 = vld [vmem:[%s372] sm:$0xf]
        %v412 = vld [vmem:[%s372 + $0x4] sm:$0xf]
        %v413 = vld [vmem:[%s372 + $0x8] sm:$0xf]
        %v414 = vld [vmem:[%s372 + $0xc] sm:$0xf]
        %v415 = vld [vmem:[%s377] sm:$0xf]
        %v416 = vld [vmem:[%s377 + $0x4] sm:$0xf]
        %v417 = vld [vmem:[%s377 + $0x8] sm:$0xf]
        %v418 = vld [vmem:[%s377 + $0xc] sm:$0xf]
        %v419 = vld [vmem:[%s377 + $0x10] sm:$0xf]
        %v420 = vld [vmem:[%s377 + $0x14] sm:$0xf]
        %v421 = vld [vmem:[%s377 + $0x18] sm:$0xf]
        %v422 = vld [vmem:[%s377 + $0x1c] sm:$0xf]
        %v423 = vld [vmem:[%s311] sm:$0xff]
        %v424 = vpack.c.bf16 %v400, %v399
        %v425 = vperm.slane %v423, 0
        %v430 = vunpack.c.l.b16 %v403
        %v431 = vunpack.c.l.b16 %v404
        %v432 = vunpack.c.l.b16 %v405
        %v433 = vunpack.c.l.b16 %v406
        %v434 = vpack.c.b16 %v431, %v430
        %v435 = vpack.c.b16 %v433, %v432
        %vm438 = vcmask 261120
        %v440 = vsel %vm438, %v424, 0
        %442 = vmatpush.bf16.msra.mxu0 0
        %443 = vmatpush.bf16.msra.mxu0 0
        %444 = vmatpush.bf16.msra.mxu0 0
        %445 = vmatpush.bf16.msra.mxu0 0
        %446 = vmatpush.bf16.msra.mxu0 0
        %447 = vmatpush.bf16.msra.mxu0 0
        %448 = vmatpush.bf16.msra.mxu0 %v435
        %449 = vmatpush.bf16.msra.mxu0 %v434
        %450 = vmatmul.bf16.gmra.mxu0 %v440
        %v451 = vpop.f32.mrf.mxu0
        %v452 = vadd.f32 %v425, %v451
        %v453 = vpop.f32.mrf.mxu0
        %v454 = vadd.f32 %v425, %v453
        %455 = vdwg.mxu0
        %v456 = vpack.c.bf16 %v402, %v401
        %v458 = vsel %vm438, %v456, 0
        %460 = vmatpush.bf16.msra.mxu0 0
        %461 = vmatpush.bf16.msra.mxu0 0
        %462 = vmatpush.bf16.msra.mxu0 0
        %463 = vmatpush.bf16.msra.mxu0 0
        %464 = vmatpush.bf16.msra.mxu0 0
        %465 = vmatpush.bf16.msra.mxu0 0
        %466 = vmatpush.bf16.msra.mxu0 %v435
        %467 = vmatpush.bf16.msra.mxu0 %v434
        %468 = vmatmul.bf16.gmra.mxu0 %v458
        %v469 = vpop.f32.mrf.mxu0
        %v470 = vadd.f32 %v425, %v469
        %v471 = vpop.f32.mrf.mxu0
        %v472 = vadd.f32 %v425, %v471
        %473 = vdwg.mxu0
        %476 = vrot.lane.b32.xlu0 %v452, 120
        %v477 = vpop.permute.xlu0 %476
        %478 = vrot.lane.b32.xlu0 %v454, 120
        %v479 = vpop.permute.xlu0 %478
        %482 = vrot.lane.b32.xlu0 %v452, 112
        %v483 = vpop.permute.xlu0 %482
        %484 = vrot.lane.b32.xlu0 %v454, 112
        %v485 = vpop.permute.xlu0 %484
        %488 = vrot.lane.b32.xlu0 %v452, 104
        %v489 = vpop.permute.xlu0 %488
        %490 = vrot.lane.b32.xlu0 %v454, 104
        %v491 = vpop.permute.xlu0 %490
        %496 = vrot.lane.b32.xlu0 %v470, 120
        %v497 = vpop.permute.xlu0 %496
        %498 = vrot.lane.b32.xlu0 %v472, 120
        %v499 = vpop.permute.xlu0 %498
        %502 = vrot.lane.b32.xlu0 %v470, 112
        %v503 = vpop.permute.xlu0 %502
        %504 = vrot.lane.b32.xlu0 %v472, 112
        %v505 = vpop.permute.xlu0 %504
        %508 = vrot.lane.b32.xlu0 %v470, 104
        %v509 = vpop.permute.xlu0 %508
        %510 = vrot.lane.b32.xlu0 %v472, 104
        %v511 = vpop.permute.xlu0 %510
        %v514 = vlaneseq
        %v515 = vand.u32 %v514, 127
        %s516 = sld [smem:[#allocation3]]
        %s517 = sld [smem:[#allocation4]]
        %v518 = vstv %s516
        %vm519 = vcmp.lt.s32.totalorder %v515, %v518
        %vm520 = vcmp.ge.s32.totalorder %v515, 8
        %s521 = sadd.s32 %s517, 8
        %v522 = vstv %s521
        %vm523 = vcmp.lt.s32.totalorder %v515, %v522
        %vm524 = vmand %vm520, %vm523
        %vm525 = vmor %vm519, %vm524
        %v526 = vsel %vm525, 0.0, -1e+09
        %s527 = sld [smem:[#allocation3 + $0x1]]
        %s528 = sld [smem:[#allocation4 + $0x1]]
        %v529 = vstv %s527
        %vm530 = vcmp.lt.s32.totalorder %v515, %v529
        %s531 = sadd.s32 %s528, 8
        %v532 = vstv %s531
        %vm533 = vcmp.lt.s32.totalorder %v515, %v532
        %vm534 = vmand %vm520, %vm533
        %vm535 = vmor %vm530, %vm534
        %v536 = vsel %vm535, 0.0, -1e+09
        %v537 = vpack.c.bf16 %v452, %v452
        %v538 = vpack.c.bf16 %v454, %v454
        %v539 = vpack.c.bf16 %v477, %v477
        %v540 = vpack.c.bf16 %v479, %v479
        %v541 = vpack.c.bf16 %v483, %v483
        %v542 = vpack.c.bf16 %v485, %v485
        %v543 = vpack.c.bf16 %v489, %v489
        %v544 = vpack.c.bf16 %v491, %v491
        %v545 = vpack.c.bf16 %v470, %v470
        %v546 = vpack.c.bf16 %v472, %v472
        %v547 = vpack.c.bf16 %v497, %v497
        %v548 = vpack.c.bf16 %v499, %v499
        %v549 = vpack.c.bf16 %v503, %v503
        %v550 = vpack.c.bf16 %v505, %v505
        %v551 = vpack.c.bf16 %v509, %v509
        %v552 = vpack.c.bf16 %v511, %v511
        %v555 = vunpack.c.l.b16 %v537
        %v556 = vunpack.c.l.b16 %v538
        %v557 = vpack.c.b16 %v556, %v555
        %558 = vrot.lane.b32.xlu0 %v557, 96
        %v559 = vpop.permute.xlu0 %558
        %vm560 = vcmask 64512
        %v562 = vsel %vm560, %v557, 0
        %v565 = vsel %vm560, %v559, 0
        %567 = vmatpush.bf16.xpose.msra.mxu0 0
        %568 = vmatpush.bf16.xpose.msra.mxu0 0
        %569 = vmatpush.bf16.xpose.msra.mxu0 0
        %570 = vmatpush.bf16.xpose.msra.mxu0 0
        %571 = vmatpush.bf16.xpose.msra.mxu0 0
        %572 = vmatpush.bf16.xpose.msra.mxu0 0
        %573 = vmatpush.bf16.xpose.msra.mxu0 0
        %574 = vmatpush.bf16.xpose.msra.mxu0 %v565
        %575 = vmatmul.bf16.gmra.mxu0 %v562
        %v576 = vpop.f32.mrf.mxu0
        %v577 = vadd.f32 0.0, %v576
        %v578 = vpop.f32.mrf.mxu0
        %v579 = vadd.f32 0.0, %v578
        %580 = vdwg.mxu0
        %v583 = vunpack.c.l.b16 %v539
        %v584 = vunpack.c.l.b16 %v540
        %v585 = vpack.c.b16 %v584, %v583
        %586 = vrot.lane.b32.xlu0 %v585, 96
        %v587 = vpop.permute.xlu0 %586
        %v589 = vsel %vm560, %v585, 0
        %v592 = vsel %vm560, %v587, 0
        %594 = vmatpush.bf16.xpose.msra.mxu0 0
        %595 = vmatpush.bf16.xpose.msra.mxu0 0
        %596 = vmatpush.bf16.xpose.msra.mxu0 0
        %597 = vmatpush.bf16.xpose.msra.mxu0 0
        %598 = vmatpush.bf16.xpose.msra.mxu0 0
        %599 = vmatpush.bf16.xpose.msra.mxu0 0
        %600 = vmatpush.bf16.xpose.msra.mxu0 0
        %601 = vmatpush.bf16.xpose.msra.mxu0 %v592
        %602 = vmatmul.bf16.gmra.mxu0 %v589
        %v603 = vpop.f32.mrf.mxu0
        %v604 = vadd.f32 0.0, %v603
        %v605 = vpop.f32.mrf.mxu0
        %v606 = vadd.f32 0.0, %v605
        %607 = vdwg.mxu0
        %v610 = vunpack.c.l.b16 %v541
        %v611 = vunpack.c.l.b16 %v542
        %v612 = vpack.c.b16 %v611, %v610
        %613 = vrot.lane.b32.xlu0 %v612, 96
        %v614 = vpop.permute.xlu0 %613
        %v616 = vsel %vm560, %v612, 0
        %v619 = vsel %vm560, %v614, 0
        %621 = vmatpush.bf16.xpose.msra.mxu0 0
        %622 = vmatpush.bf16.xpose.msra.mxu0 0
        %623 = vmatpush.bf16.xpose.msra.mxu0 0
        %624 = vmatpush.bf16.xpose.msra.mxu0 0
        %625 = vmatpush.bf16.xpose.msra.mxu0 0
        %626 = vmatpush.bf16.xpose.msra.mxu0 0
        %627 = vmatpush.bf16.xpose.msra.mxu0 0
        %628 = vmatpush.bf16.xpose.msra.mxu0 %v619
        %629 = vmatmul.bf16.gmra.mxu0 %v616
        %v630 = vpop.f32.mrf.mxu0
        %v631 = vadd.f32 0.0, %v630
        %v632 = vpop.f32.mrf.mxu0
        %v633 = vadd.f32 0.0, %v632
        %634 = vdwg.mxu0
        %v637 = vunpack.c.l.b16 %v543
        %v638 = vunpack.c.l.b16 %v544
        %v639 = vpack.c.b16 %v638, %v637
        %640 = vrot.lane.b32.xlu0 %v639, 96
        %v641 = vpop.permute.xlu0 %640
        %v643 = vsel %vm560, %v639, 0
        %v646 = vsel %vm560, %v641, 0
        %648 = vmatpush.bf16.xpose.msra.mxu0 0
        %649 = vmatpush.bf16.xpose.msra.mxu0 0
        %650 = vmatpush.bf16.xpose.msra.mxu0 0
        %651 = vmatpush.bf16.xpose.msra.mxu0 0
        %652 = vmatpush.bf16.xpose.msra.mxu0 0
        %653 = vmatpush.bf16.xpose.msra.mxu0 0
        %654 = vmatpush.bf16.xpose.msra.mxu0 0
        %655 = vmatpush.bf16.xpose.msra.mxu0 %v646
        %656 = vmatmul.bf16.gmra.mxu0 %v643
        %v657 = vpop.f32.mrf.mxu0
        %v658 = vadd.f32 0.0, %v657
        %v659 = vpop.f32.mrf.mxu0
        %v660 = vadd.f32 0.0, %v659
        %661 = vdwg.mxu0
        %v664 = vunpack.c.l.b16 %v545
        %v665 = vunpack.c.l.b16 %v546
        %v666 = vpack.c.b16 %v665, %v664
        %667 = vrot.lane.b32.xlu0 %v666, 96
        %v668 = vpop.permute.xlu0 %667
        %v670 = vsel %vm560, %v666, 0
        %v673 = vsel %vm560, %v668, 0
        %675 = vmatpush.bf16.xpose.msra.mxu0 0
        %676 = vmatpush.bf16.xpose.msra.mxu0 0
        %677 = vmatpush.bf16.xpose.msra.mxu0 0
        %678 = vmatpush.bf16.xpose.msra.mxu0 0
        %679 = vmatpush.bf16.xpose.msra.mxu0 0
        %680 = vmatpush.bf16.xpose.msra.mxu0 0
        %681 = vmatpush.bf16.xpose.msra.mxu0 0
        %682 = vmatpush.bf16.xpose.msra.mxu0 %v673
        %683 = vmatmul.bf16.gmra.mxu0 %v670
        %v684 = vpop.f32.mrf.mxu0
        %v685 = vadd.f32 0.0, %v684
        %v686 = vpop.f32.mrf.mxu0
        %v687 = vadd.f32 0.0, %v686
        %688 = vdwg.mxu0
        %v691 = vunpack.c.l.b16 %v547
        %v692 = vunpack.c.l.b16 %v548
        %v693 = vpack.c.b16 %v692, %v691
        %694 = vrot.lane.b32.xlu0 %v693, 96
        %v695 = vpop.permute.xlu0 %694
        %v697 = vsel %vm560, %v693, 0
        %v700 = vsel %vm560, %v695, 0
        %702 = vmatpush.bf16.xpose.msra.mxu0 0
        %703 = vmatpush.bf16.xpose.msra.mxu0 0
        %704 = vmatpush.bf16.xpose.msra.mxu0 0
        %705 = vmatpush.bf16.xpose.msra.mxu0 0
        %706 = vmatpush.bf16.xpose.msra.mxu0 0
        %707 = vmatpush.bf16.xpose.msra.mxu0 0
        %708 = vmatpush.bf16.xpose.msra.mxu0 0
        %709 = vmatpush.bf16.xpose.msra.mxu0 %v700
        %710 = vmatmul.bf16.gmra.mxu0 %v697
        %v711 = vpop.f32.mrf.mxu0
        %v712 = vadd.f32 0.0, %v711
        %v713 = vpop.f32.mrf.mxu0
        %v714 = vadd.f32 0.0, %v713
        %715 = vdwg.mxu0
        %v718 = vunpack.c.l.b16 %v549
        %v719 = vunpack.c.l.b16 %v550
        %v720 = vpack.c.b16 %v719, %v718
        %721 = vrot.lane.b32.xlu0 %v720, 96
        %v722 = vpop.permute.xlu0 %721
        %v724 = vsel %vm560, %v720, 0
        %v727 = vsel %vm560, %v722, 0
        %729 = vmatpush.bf16.xpose.msra.mxu0 0
        %730 = vmatpush.bf16.xpose.msra.mxu0 0
        %731 = vmatpush.bf16.xpose.msra.mxu0 0
        %732 = vmatpush.bf16.xpose.msra.mxu0 0
        %733 = vmatpush.bf16.xpose.msra.mxu0 0
        %734 = vmatpush.bf16.xpose.msra.mxu0 0
        %735 = vmatpush.bf16.xpose.msra.mxu0 0
        %736 = vmatpush.bf16.xpose.msra.mxu0 %v727
        %737 = vmatmul.bf16.gmra.mxu0 %v724
        %v738 = vpop.f32.mrf.mxu0
        %v739 = vadd.f32 0.0, %v738
        %v740 = vpop.f32.mrf.mxu0
        %v741 = vadd.f32 0.0, %v740
        %742 = vdwg.mxu0
        %v745 = vunpack.c.l.b16 %v551
        %v746 = vunpack.c.l.b16 %v552
        %v747 = vpack.c.b16 %v746, %v745
        %748 = vrot.lane.b32.xlu0 %v747, 96
        %v749 = vpop.permute.xlu0 %748
        %v751 = vsel %vm560, %v747, 0
        %v754 = vsel %vm560, %v749, 0
        %756 = vmatpush.bf16.xpose.msra.mxu0 0
        %757 = vmatpush.bf16.xpose.msra.mxu0 0
        %758 = vmatpush.bf16.xpose.msra.mxu0 0
        %759 = vmatpush.bf16.xpose.msra.mxu0 0
        %760 = vmatpush.bf16.xpose.msra.mxu0 0
        %761 = vmatpush.bf16.xpose.msra.mxu0 0
        %762 = vmatpush.bf16.xpose.msra.mxu0 0
        %763 = vmatpush.bf16.xpose.msra.mxu0 %v754
        %764 = vmatmul.bf16.gmra.mxu0 %v751
        %v765 = vpop.f32.mrf.mxu0
        %v766 = vadd.f32 0.0, %v765
        %v767 = vpop.f32.mrf.mxu0
        %v768 = vadd.f32 0.0, %v767
        %769 = vdwg.mxu0
        %v770 = vmul.f32 %v577, 0.35355338
        %v771 = vmul.f32 %v579, 0.35355338
        %v772 = vmul.f32 %v604, 0.35355338
        %v773 = vmul.f32 %v606, 0.35355338
        %v774 = vmul.f32 %v631, 0.35355338
        %v775 = vmul.f32 %v633, 0.35355338
        %v776 = vmul.f32 %v658, 0.35355338
        %v777 = vmul.f32 %v660, 0.35355338
        %v778 = vmul.f32 %v685, 0.35355338
        %v779 = vmul.f32 %v687, 0.35355338
        %v780 = vmul.f32 %v712, 0.35355338
        %v781 = vmul.f32 %v714, 0.35355338
        %v782 = vmul.f32 %v739, 0.35355338
        %v783 = vmul.f32 %v741, 0.35355338
        %v784 = vmul.f32 %v766, 0.35355338
        %v785 = vmul.f32 %v768, 0.35355338
        %v786 = vperm.slane %v526, 0
        %v787 = vperm.slane %v536, 0
        %v788 = vadd.f32 %v770, %v786
        %v789 = vadd.f32 %v771, %v786
        %v790 = vadd.f32 %v772, %v786
        %v791 = vadd.f32 %v773, %v786
        %v792 = vadd.f32 %v774, %v786
        %v793 = vadd.f32 %v775, %v786
        %v794 = vadd.f32 %v776, %v786
        %v795 = vadd.f32 %v777, %v786
        %v796 = vadd.f32 %v778, %v787
        %v797 = vadd.f32 %v779, %v787
        %v798 = vadd.f32 %v780, %v787
        %v799 = vadd.f32 %v781, %v787
        %v800 = vadd.f32 %v782, %v787
        %v801 = vadd.f32 %v783, %v787
        %v802 = vadd.f32 %v784, %v787
        %v803 = vadd.f32 %v785, %v787
        %vm804 = vcmask 97280
        %v805 = vsel %vm804, %v788, -inf
        %806 = vmax.xlane.f32.xlu0 %v805
        %v807 = vpop.xlane.xlu0 %806
        %vm808 = vcmask 93184
        %v809 = vsel %vm808, %v789, -inf
        %810 = vmax.xlane.f32.xlu0 %v809
        %v811 = vpop.xlane.xlu0 %810
        %v812 = vsel %vm804, %v790, -inf
        %813 = vmax.xlane.f32.xlu0 %v812
        %v814 = vpop.xlane.xlu0 %813
        %v815 = vsel %vm808, %v791, -inf
        %816 = vmax.xlane.f32.xlu0 %v815
        %v817 = vpop.xlane.xlu0 %816
        %v818 = vsel %vm804, %v792, -inf
        %819 = vmax.xlane.f32.xlu0 %v818
        %v820 = vpop.xlane.xlu0 %819
        %v821 = vsel %vm808, %v793, -inf
        %822 = vmax.xlane.f32.xlu0 %v821
        %v823 = vpop.xlane.xlu0 %822
        %v824 = vsel %vm804, %v794, -inf
        %825 = vmax.xlane.f32.xlu0 %v824
        %v826 = vpop.xlane.xlu0 %825
        %v827 = vsel %vm808, %v795, -inf
        %828 = vmax.xlane.f32.xlu0 %v827
        %v829 = vpop.xlane.xlu0 %828
        %v830 = vsel %vm804, %v796, -inf
        %831 = vmax.xlane.f32.xlu0 %v830
        %v832 = vpop.xlane.xlu0 %831
        %v833 = vsel %vm808, %v797, -inf
        %834 = vmax.xlane.f32.xlu0 %v833
        %v835 = vpop.xlane.xlu0 %834
        %v836 = vsel %vm804, %v798, -inf
        %837 = vmax.xlane.f32.xlu0 %v836
        %v838 = vpop.xlane.xlu0 %837
        %v839 = vsel %vm808, %v799, -inf
        %840 = vmax.xlane.f32.xlu0 %v839
        %v841 = vpop.xlane.xlu0 %840
        %v842 = vsel %vm804, %v800, -inf
        %843 = vmax.xlane.f32.xlu0 %v842
        %v844 = vpop.xlane.xlu0 %843
        %v845 = vsel %vm808, %v801, -inf
        %846 = vmax.xlane.f32.xlu0 %v845
        %v847 = vpop.xlane.xlu0 %846
        %v848 = vsel %vm804, %v802, -inf
        %849 = vmax.xlane.f32.xlu0 %v848
        %v850 = vpop.xlane.xlu0 %849
        %v851 = vsel %vm808, %v803, -inf
        %852 = vmax.xlane.f32.xlu0 %v851
        %v853 = vpop.xlane.xlu0 %852
        %v854 = vsub.f32 %v788, %v807
        %v855 = vsub.f32 %v789, %v811
        %v856 = vsub.f32 %v790, %v814
        %v857 = vsub.f32 %v791, %v817
        %v858 = vsub.f32 %v792, %v820
        %v859 = vsub.f32 %v793, %v823
        %v860 = vsub.f32 %v794, %v826
        %v861 = vsub.f32 %v795, %v829
        %v862 = vsub.f32 %v796, %v832
        %v863 = vsub.f32 %v797, %v835
        %v864 = vsub.f32 %v798, %v838
        %v865 = vsub.f32 %v799, %v841
        %v866 = vsub.f32 %v800, %v844
        %v867 = vsub.f32 %v801, %v847
        %v868 = vsub.f32 %v802, %v850
        %v869 = vsub.f32 %v803, %v853
        %v870 = vmul.f32 %v854, 1.442695
        %v871 = vpow.pop %v870
        %v872 = vmul.f32 %v855, 1.442695
        %v873 = vpow.pop %v872
        %v874 = vmul.f32 %v856, 1.442695
        %v875 = vpow.pop %v874
        %v876 = vmul.f32 %v857, 1.442695
        %v877 = vpow.pop %v876
        %v878 = vmul.f32 %v858, 1.442695
        %v879 = vpow.pop %v878
        %v880 = vmul.f32 %v859, 1.442695
        %v881 = vpow.pop %v880
        %v882 = vmul.f32 %v860, 1.442695
        %v883 = vpow.pop %v882
        %v884 = vmul.f32 %v861, 1.442695
        %v885 = vpow.pop %v884
        %v886 = vmul.f32 %v862, 1.442695
        %v887 = vpow.pop %v886
        %v888 = vmul.f32 %v863, 1.442695
        %v889 = vpow.pop %v888
        %v890 = vmul.f32 %v864, 1.442695
        %v891 = vpow.pop %v890
        %v892 = vmul.f32 %v865, 1.442695
        %v893 = vpow.pop %v892
        %v894 = vmul.f32 %v866, 1.442695
        %v895 = vpow.pop %v894
        %v896 = vmul.f32 %v867, 1.442695
        %v897 = vpow.pop %v896
        %v898 = vmul.f32 %v868, 1.442695
        %v899 = vpow.pop %v898
        %v900 = vmul.f32 %v869, 1.442695
        %v901 = vpow.pop %v900
        %v902 = vsel %vm804, %v871, 0.0
        %903 = vadd.xlane.f32.xlu0 %v902
        %v904 = vpop.xlane.xlu0 %903
        %v905 = vsel %vm808, %v873, 0.0
        %906 = vadd.xlane.f32.xlu0 %v905
        %v907 = vpop.xlane.xlu0 %906
        %v908 = vsel %vm804, %v875, 0.0
        %909 = vadd.xlane.f32.xlu0 %v908
        %v910 = vpop.xlane.xlu0 %909
        %v911 = vsel %vm808, %v877, 0.0
        %912 = vadd.xlane.f32.xlu0 %v911
        %v913 = vpop.xlane.xlu0 %912
        %v914 = vsel %vm804, %v879, 0.0
        %915 = vadd.xlane.f32.xlu0 %v914
        %v916 = vpop.xlane.xlu0 %915
        %v917 = vsel %vm808, %v881, 0.0
        %918 = vadd.xlane.f32.xlu0 %v917
        %v919 = vpop.xlane.xlu0 %918
        %v920 = vsel %vm804, %v883, 0.0
        %921 = vadd.xlane.f32.xlu0 %v920
        %v922 = vpop.xlane.xlu0 %921
        %v923 = vsel %vm808, %v885, 0.0
        %924 = vadd.xlane.f32.xlu0 %v923
        %v925 = vpop.xlane.xlu0 %924
        %v926 = vsel %vm804, %v887, 0.0
        %927 = vadd.xlane.f32.xlu0 %v926
        %v928 = vpop.xlane.xlu0 %927
        %v929 = vsel %vm808, %v889, 0.0
        %930 = vadd.xlane.f32.xlu0 %v929
        %v931 = vpop.xlane.xlu0 %930
        %v932 = vsel %vm804, %v891, 0.0
        %933 = vadd.xlane.f32.xlu0 %v932
        %v934 = vpop.xlane.xlu0 %933
        %v935 = vsel %vm808, %v893, 0.0
        %936 = vadd.xlane.f32.xlu0 %v935
        %v937 = vpop.xlane.xlu0 %936
        %v938 = vsel %vm804, %v895, 0.0
        %939 = vadd.xlane.f32.xlu0 %v938
        %v940 = vpop.xlane.xlu0 %939
        %v941 = vsel %vm808, %v897, 0.0
        %942 = vadd.xlane.f32.xlu0 %v941
        %v943 = vpop.xlane.xlu0 %942
        %v944 = vsel %vm804, %v899, 0.0
        %945 = vadd.xlane.f32.xlu0 %v944
        %v946 = vpop.xlane.xlu0 %945
        %v947 = vsel %vm808, %v901, 0.0
        %948 = vadd.xlane.f32.xlu0 %v947
        %v949 = vpop.xlane.xlu0 %948
        %v950 = vrcp.pop %v904
        %v951 = vrcp.pop %v907
        %v952 = vrcp.pop %v910
        %v953 = vrcp.pop %v913
        %v954 = vrcp.pop %v916
        %v955 = vrcp.pop %v919
        %v956 = vrcp.pop %v922
        %v957 = vrcp.pop %v925
        %v958 = vrcp.pop %v928
        %v959 = vrcp.pop %v931
        %v960 = vrcp.pop %v934
        %v961 = vrcp.pop %v937
        %v962 = vrcp.pop %v940
        %v963 = vrcp.pop %v943
        %v964 = vrcp.pop %v946
        %v965 = vrcp.pop %v949
        %v966 = vmul.f32 %v871, %v950
        %v967 = vmul.f32 %v873, %v951
        %v968 = vmul.f32 %v875, %v952
        %v969 = vmul.f32 %v877, %v953
        %v970 = vmul.f32 %v879, %v954
        %v971 = vmul.f32 %v881, %v955
        %v972 = vmul.f32 %v883, %v956
        %v973 = vmul.f32 %v885, %v957
        %v974 = vmul.f32 %v887, %v958
        %v975 = vmul.f32 %v889, %v959
        %v976 = vmul.f32 %v891, %v960
        %v977 = vmul.f32 %v893, %v961
        %v978 = vmul.f32 %v895, %v962
        %v979 = vmul.f32 %v897, %v963
        %v980 = vmul.f32 %v899, %v964
        %v981 = vmul.f32 %v901, %v965
        %v982 = vpack.c.bf16 %v966, %v966
        %v983 = vpack.c.bf16 %v967, %v967
        %v984 = vpack.c.bf16 %v968, %v968
        %v985 = vpack.c.bf16 %v969, %v969
        %v986 = vpack.c.bf16 %v970, %v970
        %v987 = vpack.c.bf16 %v971, %v971
        %v988 = vpack.c.bf16 %v972, %v972
        %v989 = vpack.c.bf16 %v973, %v973
        %v990 = vpack.c.bf16 %v974, %v974
        %v991 = vpack.c.bf16 %v975, %v975
        %v992 = vpack.c.bf16 %v976, %v976
        %v993 = vpack.c.bf16 %v977, %v977
        %v994 = vpack.c.bf16 %v978, %v978
        %v995 = vpack.c.bf16 %v979, %v979
        %v996 = vpack.c.bf16 %v980, %v980
        %v997 = vpack.c.bf16 %v981, %v981
        %v1000 = vunpack.c.l.b16 %v982
        %v1001 = vunpack.c.l.b16 %v983
        %v1002 = vpack.c.b16 %v1001, %v1000
        %1003 = vrot.lane.b32.xlu0 %v557, 64
        %v1004 = vpop.permute.xlu0 %1003
        %v1006 = vsel %vm804, %v1002, 0
        %vm1008 = vcmask 1045504
        %v1010 = vsel %vm1008, %v1004, 0
        %1012 = vmatpush.bf16.msra.mxu0 0
        %1013 = vmatpush.bf16.msra.mxu0 0
        %1014 = vmatpush.bf16.msra.mxu0 0
        %1015 = vmatpush.bf16.msra.mxu0 0
        %1016 = vmatpush.bf16.msra.mxu0 0
        %1017 = vmatpush.bf16.msra.mxu0 0
        %1018 = vmatpush.bf16.msra.mxu0 0
        %1019 = vmatpush.bf16.msra.mxu0 %v1010
        %1020 = vmatmul.bf16.gmra.mxu0 %v1006
        %v1021 = vpop.f32.mrf.mxu0
        %v1022 = vadd.f32 0.0, %v1021
        %v1023 = vpop.f32.mrf.mxu0
        %v1024 = vadd.f32 0.0, %v1023
        %1025 = vdwg.mxu0
        %v1028 = vunpack.c.l.b16 %v984
        %v1029 = vunpack.c.l.b16 %v985
        %v1030 = vpack.c.b16 %v1029, %v1028
        %1031 = vrot.lane.b32.xlu0 %v585, 64
        %v1032 = vpop.permute.xlu0 %1031
        %v1034 = vsel %vm804, %v1030, 0
        %v1037 = vsel %vm1008, %v1032, 0
        %1039 = vmatpush.bf16.msra.mxu0 0
        %1040 = vmatpush.bf16.msra.mxu0 0
        %1041 = vmatpush.bf16.msra.mxu0 0
        %1042 = vmatpush.bf16.msra.mxu0 0
        %1043 = vmatpush.bf16.msra.mxu0 0
        %1044 = vmatpush.bf16.msra.mxu0 0
        %1045 = vmatpush.bf16.msra.mxu0 0
        %1046 = vmatpush.bf16.msra.mxu0 %v1037
        %1047 = vmatmul.bf16.gmra.mxu0 %v1034
        %v1048 = vpop.f32.mrf.mxu0
        %v1049 = vadd.f32 0.0, %v1048
        %v1050 = vpop.f32.mrf.mxu0
        %v1051 = vadd.f32 0.0, %v1050
        %1052 = vdwg.mxu0
        %v1055 = vunpack.c.l.b16 %v986
        %v1056 = vunpack.c.l.b16 %v987
        %v1057 = vpack.c.b16 %v1056, %v1055
        %1058 = vrot.lane.b32.xlu0 %v612, 64
        %v1059 = vpop.permute.xlu0 %1058
        %v1061 = vsel %vm804, %v1057, 0
        %v1064 = vsel %vm1008, %v1059, 0
        %1066 = vmatpush.bf16.msra.mxu0 0
        %1067 = vmatpush.bf16.msra.mxu0 0
        %1068 = vmatpush.bf16.msra.mxu0 0
        %1069 = vmatpush.bf16.msra.mxu0 0
        %1070 = vmatpush.bf16.msra.mxu0 0
        %1071 = vmatpush.bf16.msra.mxu0 0
        %1072 = vmatpush.bf16.msra.mxu0 0
        %1073 = vmatpush.bf16.msra.mxu0 %v1064
        %1074 = vmatmul.bf16.gmra.mxu0 %v1061
        %v1075 = vpop.f32.mrf.mxu0
        %v1076 = vadd.f32 0.0, %v1075
        %v1077 = vpop.f32.mrf.mxu0
        %v1078 = vadd.f32 0.0, %v1077
        %1079 = vdwg.mxu0
        %v1082 = vunpack.c.l.b16 %v988
        %v1083 = vunpack.c.l.b16 %v989
        %v1084 = vpack.c.b16 %v1083, %v1082
        %1085 = vrot.lane.b32.xlu0 %v639, 64
        %v1086 = vpop.permute.xlu0 %1085
        %v1088 = vsel %vm804, %v1084, 0
        %v1091 = vsel %vm1008, %v1086, 0
        %1093 = vmatpush.bf16.msra.mxu0 0
        %1094 = vmatpush.bf16.msra.mxu0 0
        %1095 = vmatpush.bf16.msra.mxu0 0
        %1096 = vmatpush.bf16.msra.mxu0 0
        %1097 = vmatpush.bf16.msra.mxu0 0
        %1098 = vmatpush.bf16.msra.mxu0 0
        %1099 = vmatpush.bf16.msra.mxu0 0
        %1100 = vmatpush.bf16.msra.mxu0 %v1091
        %1101 = vmatmul.bf16.gmra.mxu0 %v1088
        %v1102 = vpop.f32.mrf.mxu0
        %v1103 = vadd.f32 0.0, %v1102
        %v1104 = vpop.f32.mrf.mxu0
        %v1105 = vadd.f32 0.0, %v1104
        %1106 = vdwg.mxu0
        %v1109 = vunpack.c.l.b16 %v990
        %v1110 = vunpack.c.l.b16 %v991
        %v1111 = vpack.c.b16 %v1110, %v1109
        %1112 = vrot.lane.b32.xlu0 %v666, 64
        %v1113 = vpop.permute.xlu0 %1112
        %v1115 = vsel %vm804, %v1111, 0
        %v1118 = vsel %vm1008, %v1113, 0
        %1120 = vmatpush.bf16.msra.mxu0 0
        %1121 = vmatpush.bf16.msra.mxu0 0
        %1122 = vmatpush.bf16.msra.mxu0 0
        %1123 = vmatpush.bf16.msra.mxu0 0
        %1124 = vmatpush.bf16.msra.mxu0 0
        %1125 = vmatpush.bf16.msra.mxu0 0
        %1126 = vmatpush.bf16.msra.mxu0 0
        %1127 = vmatpush.bf16.msra.mxu0 %v1118
        %1128 = vmatmul.bf16.gmra.mxu0 %v1115
        %v1129 = vpop.f32.mrf.mxu0
        %v1130 = vadd.f32 0.0, %v1129
        %v1131 = vpop.f32.mrf.mxu0
        %v1132 = vadd.f32 0.0, %v1131
        %1133 = vdwg.mxu0
        %v1136 = vunpack.c.l.b16 %v992
        %v1137 = vunpack.c.l.b16 %v993
        %v1138 = vpack.c.b16 %v1137, %v1136
        %1139 = vrot.lane.b32.xlu0 %v693, 64
        %v1140 = vpop.permute.xlu0 %1139
        %v1142 = vsel %vm804, %v1138, 0
        %v1145 = vsel %vm1008, %v1140, 0
        %1147 = vmatpush.bf16.msra.mxu0 0
        %1148 = vmatpush.bf16.msra.mxu0 0
        %1149 = vmatpush.bf16.msra.mxu0 0
        %1150 = vmatpush.bf16.msra.mxu0 0
        %1151 = vmatpush.bf16.msra.mxu0 0
        %1152 = vmatpush.bf16.msra.mxu0 0
        %1153 = vmatpush.bf16.msra.mxu0 0
        %1154 = vmatpush.bf16.msra.mxu0 %v1145
        %1155 = vmatmul.bf16.gmra.mxu0 %v1142
        %v1156 = vpop.f32.mrf.mxu0
        %v1157 = vadd.f32 0.0, %v1156
        %v1158 = vpop.f32.mrf.mxu0
        %v1159 = vadd.f32 0.0, %v1158
        %1160 = vdwg.mxu0
        %v1163 = vunpack.c.l.b16 %v994
        %v1164 = vunpack.c.l.b16 %v995
        %v1165 = vpack.c.b16 %v1164, %v1163
        %1166 = vrot.lane.b32.xlu0 %v720, 64
        %v1167 = vpop.permute.xlu0 %1166
        %v1169 = vsel %vm804, %v1165, 0
        %v1172 = vsel %vm1008, %v1167, 0
        %1174 = vmatpush.bf16.msra.mxu0 0
        %1175 = vmatpush.bf16.msra.mxu0 0
        %1176 = vmatpush.bf16.msra.mxu0 0
        %1177 = vmatpush.bf16.msra.mxu0 0
        %1178 = vmatpush.bf16.msra.mxu0 0
        %1179 = vmatpush.bf16.msra.mxu0 0
        %1180 = vmatpush.bf16.msra.mxu0 0
        %1181 = vmatpush.bf16.msra.mxu0 %v1172
        %1182 = vmatmul.bf16.gmra.mxu0 %v1169
        %v1183 = vpop.f32.mrf.mxu0
        %v1184 = vadd.f32 0.0, %v1183
        %v1185 = vpop.f32.mrf.mxu0
        %v1186 = vadd.f32 0.0, %v1185
        %1187 = vdwg.mxu0
        %v1190 = vunpack.c.l.b16 %v996
        %v1191 = vunpack.c.l.b16 %v997
        %v1192 = vpack.c.b16 %v1191, %v1190
        %1193 = vrot.lane.b32.xlu0 %v747, 64
        %v1194 = vpop.permute.xlu0 %1193
        %v1196 = vsel %vm804, %v1192, 0
        %v1199 = vsel %vm1008, %v1194, 0
        %1201 = vmatpush.bf16.msra.mxu0 0
        %1202 = vmatpush.bf16.msra.mxu0 0
        %1203 = vmatpush.bf16.msra.mxu0 0
        %1204 = vmatpush.bf16.msra.mxu0 0
        %1205 = vmatpush.bf16.msra.mxu0 0
        %1206 = vmatpush.bf16.msra.mxu0 0
        %1207 = vmatpush.bf16.msra.mxu0 0
        %1208 = vmatpush.bf16.msra.mxu0 %v1199
        %1209 = vmatmul.bf16.gmra.mxu0 %v1196
        %v1210 = vpop.f32.mrf.mxu0
        %v1211 = vadd.f32 0.0, %v1210
        %v1212 = vpop.f32.mrf.mxu0
        %v1213 = vadd.f32 0.0, %v1212
        %1214 = vdwg.mxu0
        %1217 = vrot.lane.b32.xlu0 %v1049, 8
        %v1218 = vpop.permute.xlu0 %1217
        %1219 = vrot.lane.b32.xlu0 %v1051, 8
        %v1220 = vpop.permute.xlu0 %1219
        %1225 = vrot.lane.b32.xlu0 %v1076, 16
        %v1226 = vpop.permute.xlu0 %1225
        %1227 = vrot.lane.b32.xlu0 %v1078, 16
        %v1228 = vpop.permute.xlu0 %1227
        %1233 = vrot.lane.b32.xlu0 %v1103, 24
        %v1234 = vpop.permute.xlu0 %1233
        %1235 = vrot.lane.b32.xlu0 %v1105, 24
        %v1236 = vpop.permute.xlu0 %1235
        %v1239 = vsel %vm560, %v1022, %v1218
        %v1240 = vsel %vm560, %v1024, %v1220
        %vm1241 = vcmask 130048
        %v1242 = vsel %vm1241, %v1239, %v1226
        %v1243 = vsel %vm1241, %v1240, %v1228
        %vm1244 = vcmask 195584
        %v1245 = vsel %vm1244, %v1242, %v1234
        %v1246 = vsel %vm1244, %v1243, %v1236
        %v1247 = vpack.c.bf16 %v1246, %v1245
        %v1248 = vperm.slane %v423, 1
        %v1253 = vunpack.c.l.b16 %v407
        %v1254 = vunpack.c.l.b16 %v408
        %v1255 = vunpack.c.l.b16 %v409
        %v1256 = vunpack.c.l.b16 %v410
        %v1257 = vpack.c.b16 %v1254, %v1253
        %v1258 = vpack.c.b16 %v1256, %v1255
        %v1262 = vsel %vm438, %v1247, 0
        %1264 = vmatpush.bf16.msra.mxu0 0
        %1265 = vmatpush.bf16.msra.mxu0 0
        %1266 = vmatpush.bf16.msra.mxu0 0
        %1267 = vmatpush.bf16.msra.mxu0 0
        %1268 = vmatpush.bf16.msra.mxu0 0
        %1269 = vmatpush.bf16.msra.mxu0 0
        %1270 = vmatpush.bf16.msra.mxu0 %v1258
        %1271 = vmatpush.bf16.msra.mxu0 %v1257
        %1272 = vmatmul.bf16.gmra.mxu0 %v1262
        %v1273 = vpop.f32.mrf.mxu0
        %v1274 = vadd.f32 %v1248, %v1273
        %v1275 = vpop.f32.mrf.mxu0
        %v1276 = vadd.f32 %v1248, %v1275
        %1277 = vdwg.mxu0
        %v1278 = vadd.f32 %v399, %v1274
        %v1279 = vadd.f32 %v400, %v1276
        %v1280 = vsel %vm438, %v1278, 0.0
        %1281 = vadd.xlane.f32.xlu0 %v1280
        %v1282 = vpop.xlane.xlu0 %1281
        %vm1283 = vcmask 257024
        %v1284 = vsel %vm1283, %v1279, 0.0
        %1285 = vadd.xlane.f32.xlu0 %v1284
        %v1286 = vpop.xlane.xlu0 %1285
        %v1287 = vrcp.pop 32.0
        %v1288 = vmul.f32 32.0, %v1287
        %v1289 = vsub.f32 1.0, %v1288
        %v1290 = vmul.f32 %v1287, %v1289
        %v1291 = vadd.f32 %v1287, %v1290
        %vm1292 = vweird.f32 %v1287
        %v1293 = vsel %vm1292, %v1287, %v1291
        %v1294 = vmul.f32 %v1282, %v1293
        %v1295 = vmul.f32 %v1286, %v1293
        %v1296 = vsub.f32 %v1278, %v1294
        %v1297 = vsub.f32 %v1279, %v1295
        %v1298 = vmul.f32 %v1296, %v1296
        %v1299 = vmul.f32 %v1297, %v1297
        %v1300 = vsel %vm438, %v1298, 0.0
        %1301 = vadd.xlane.f32.xlu0 %v1300
        %v1302 = vpop.xlane.xlu0 %1301
        %v1303 = vsel %vm1283, %v1299, 0.0
        %1304 = vadd.xlane.f32.xlu0 %v1303
        %v1305 = vpop.xlane.xlu0 %1304
        %v1306 = vmul.f32 %v1302, %v1293
        %v1307 = vmul.f32 %v1305, %v1293
        %v1308 = vadd.f32 %v1306, 1e-05
        %v1309 = vadd.f32 %v1307, 1e-05
        %v1310 = vrsqrt.pop %v1308
        %v1311 = vmul.f32 %v1310, %v1308
        %v1312 = vmul.f32 %v1311, %v1310
        %v1313 = vmul.f32 0.5, %v1312
        %v1314 = vsub.f32 1.5, %v1313
        %v1315 = vmul.f32 %v1310, %v1314
        %vm1316 = vweird.f32 %v1308
        %vm1317 = vweird.f32 %v1310
        %vm1318 = vmor %vm1316, %vm1317
        %v1319 = vsel %vm1318, %v1310, %v1315
        %v1320 = vrsqrt.pop %v1309
        %v1321 = vmul.f32 %v1320, %v1309
        %v1322 = vmul.f32 %v1321, %v1320
        %v1323 = vmul.f32 0.5, %v1322
        %v1324 = vsub.f32 1.5, %v1323
        %v1325 = vmul.f32 %v1320, %v1324
        %vm1326 = vweird.f32 %v1309
        %vm1327 = vweird.f32 %v1320
        %vm1328 = vmor %vm1326, %vm1327
        %v1329 = vsel %vm1328, %v1320, %v1325
        %v1330 = vmul.f32 %v1296, %v1319
        %v1331 = vmul.f32 %v1297, %v1329
        %v1332 = vperm.slane %v423, 4
        %v1333 = vmul.f32 %v1330, %v1332
        %v1334 = vmul.f32 %v1331, %v1332
        %v1335 = vperm.slane %v423, 5
        %v1336 = vadd.f32 %v1333, %v1335
        %v1337 = vadd.f32 %v1334, %v1335
        %v1338 = vpack.c.bf16 %v1337, %v1336
        %v1339 = vperm.slane %v423, 2
        %v1344 = vunpack.c.l.b16 %v411
        %v1345 = vunpack.c.l.b16 %v412
        %v1346 = vunpack.c.l.b16 %v413
        %v1347 = vunpack.c.l.b16 %v414
        %v1348 = vpack.c.b16 %v1345, %v1344
        %v1349 = vpack.c.b16 %v1347, %v1346
        %v1353 = vsel %vm438, %v1338, 0
        %1355 = vmatpush.bf16.msra.mxu0 0
        %1356 = vmatpush.bf16.msra.mxu0 0
        %1357 = vmatpush.bf16.msra.mxu0 0
        %1358 = vmatpush.bf16.msra.mxu0 0
        %1359 = vmatpush.bf16.msra.mxu0 0
        %1360 = vmatpush.bf16.msra.mxu0 0
        %1361 = vmatpush.bf16.msra.mxu0 %v1349
        %1362 = vmatpush.bf16.msra.mxu0 %v1348
        %1363 = vmatmul.bf16.gmra.mxu0 %v1353
        %v1364 = vpop.f32.mrf.mxu0
        %v1365 = vadd.f32 %v1339, %v1364
        %v1366 = vpop.f32.mrf.mxu0
        %v1367 = vadd.f32 %v1339, %v1366
        %1368 = vdwg.mxu0
        %v1369 = vmax.f32 %v1365, 0.0
        %v1370 = vmax.f32 %v1367, 0.0
        %v1371 = vpack.c.bf16 %v1370, %v1369
        %v1372 = vperm.slane %v423, 3
        %v1381 = vunpack.c.l.b16 %v415
        %v1382 = vunpack.c.l.b16 %v416
        %v1383 = vunpack.c.l.b16 %v417
        %v1384 = vunpack.c.l.b16 %v418
        %v1385 = vunpack.c.l.b16 %v419
        %v1386 = vunpack.c.l.b16 %v420
        %v1387 = vunpack.c.l.b16 %v421
        %v1388 = vunpack.c.l.b16 %v422
        %v1389 = vpack.c.b16 %v1382, %v1381
        %v1390 = vpack.c.b16 %v1384, %v1383
        %v1391 = vpack.c.b16 %v1386, %v1385
        %v1392 = vpack.c.b16 %v1388, %v1387
        %vm1397 = vcmask 523264
        %v1399 = vsel %vm1397, %v1371, 0
        %1401 = vmatpush.bf16.msra.mxu0 0
        %1402 = vmatpush.bf16.msra.mxu0 0
        %1403 = vmatpush.bf16.msra.mxu0 0
        %1404 = vmatpush.bf16.msra.mxu0 0
        %1405 = vmatpush.bf16.msra.mxu0 %v1392
        %1406 = vmatpush.bf16.msra.mxu0 %v1391
        %1407 = vmatpush.bf16.msra.mxu0 %v1390
        %1408 = vmatpush.bf16.msra.mxu0 %v1389
        %1409 = vmatmul.bf16.gmra.mxu0 %v1399
        %v1410 = vpop.f32.mrf.mxu0
        %v1411 = vadd.f32 %v1372, %v1410
        %v1412 = vpop.f32.mrf.mxu0
        %v1413 = vadd.f32 %v1372, %v1412
        %1414 = vdwg.mxu0
        %v1415 = vadd.f32 %v1336, %v1411
        %v1416 = vadd.f32 %v1337, %v1413
        %v1417 = vsel %vm438, %v1415, 0.0
        %1418 = vadd.xlane.f32.xlu0 %v1417
        %v1419 = vpop.xlane.xlu0 %1418
        %v1420 = vsel %vm1283, %v1416, 0.0
        %1421 = vadd.xlane.f32.xlu0 %v1420
        %v1422 = vpop.xlane.xlu0 %1421
        %v1423 = vmul.f32 %v1419, %v1293
        %v1424 = vmul.f32 %v1422, %v1293
        %v1425 = vsub.f32 %v1415, %v1423
        %v1426 = vsub.f32 %v1416, %v1424
        %v1427 = vmul.f32 %v1425, %v1425
        %v1428 = vmul.f32 %v1426, %v1426
        %v1429 = vsel %vm438, %v1427, 0.0
        %1430 = vadd.xlane.f32.xlu0 %v1429
        %v1431 = vpop.xlane.xlu0 %1430
        %v1432 = vsel %vm1283, %v1428, 0.0
        %1433 = vadd.xlane.f32.xlu0 %v1432
        %v1434 = vpop.xlane.xlu0 %1433
        %v1435 = vmul.f32 %v1431, %v1293
        %v1436 = vmul.f32 %v1434, %v1293
        %v1437 = vadd.f32 %v1435, 1e-05
        %v1438 = vadd.f32 %v1436, 1e-05
        %v1439 = vrsqrt.pop %v1437
        %v1440 = vmul.f32 %v1439, %v1437
        %v1441 = vmul.f32 %v1440, %v1439
        %v1442 = vmul.f32 0.5, %v1441
        %v1443 = vsub.f32 1.5, %v1442
        %v1444 = vmul.f32 %v1439, %v1443
        %vm1445 = vweird.f32 %v1437
        %vm1446 = vweird.f32 %v1439
        %vm1447 = vmor %vm1445, %vm1446
        %v1448 = vsel %vm1447, %v1439, %v1444
        %v1449 = vrsqrt.pop %v1438
        %v1450 = vmul.f32 %v1449, %v1438
        %v1451 = vmul.f32 %v1450, %v1449
        %v1452 = vmul.f32 0.5, %v1451
        %v1453 = vsub.f32 1.5, %v1452
        %v1454 = vmul.f32 %v1449, %v1453
        %vm1455 = vweird.f32 %v1438
        %vm1456 = vweird.f32 %v1449
        %vm1457 = vmor %vm1455, %vm1456
        %v1458 = vsel %vm1457, %v1449, %v1454
        %v1459 = vmul.f32 %v1425, %v1448
        %v1460 = vmul.f32 %v1426, %v1458
        %v1461 = vperm.slane %v423, 6
        %v1462 = vmul.f32 %v1459, %v1461
        %v1463 = vmul.f32 %v1460, %v1461
        %v1464 = vperm.slane %v423, 7
        %v1465 = vadd.f32 %v1462, %v1464
        %v1466 = vadd.f32 %v1463, %v1464
        %1467 = vst.msk [vmem:[%s9] sm:$0xff] %vm438, %v1465
        %1468 = vst.msk [vmem:[%s9 + $0x8] sm:$0xf] %vm1283, %v1466
        %1471 = vrot.lane.b32.xlu0 %v1157, 8
        %v1472 = vpop.permute.xlu0 %1471
        %1473 = vrot.lane.b32.xlu0 %v1159, 8
        %v1474 = vpop.permute.xlu0 %1473
        %1479 = vrot.lane.b32.xlu0 %v1184, 16
        %v1480 = vpop.permute.xlu0 %1479
        %1481 = vrot.lane.b32.xlu0 %v1186, 16
        %v1482 = vpop.permute.xlu0 %1481
        %1487 = vrot.lane.b32.xlu0 %v1211, 24
        %v1488 = vpop.permute.xlu0 %1487
        %1489 = vrot.lane.b32.xlu0 %v1213, 24
        %v1490 = vpop.permute.xlu0 %1489
        %v1493 = vsel %vm560, %v1130, %v1472
        %v1494 = vsel %vm560, %v1132, %v1474
        %v1495 = vsel %vm1241, %v1493, %v1480
        %v1496 = vsel %vm1241, %v1494, %v1482
        %v1497 = vsel %vm1244, %v1495, %v1488
        %v1498 = vsel %vm1244, %v1496, %v1490
        %v1499 = vpack.c.bf16 %v1498, %v1497
        %v1501 = vsel %vm438, %v1499, 0
        %1503 = vmatpush.bf16.msra.mxu0 0
        %1504 = vmatpush.bf16.msra.mxu0 0
        %1505 = vmatpush.bf16.msra.mxu0 0
        %1506 = vmatpush.bf16.msra.mxu0 0
        %1507 = vmatpush.bf16.msra.mxu0 0
        %1508 = vmatpush.bf16.msra.mxu0 0
        %1509 = vmatpush.bf16.msra.mxu0 %v1258
        %1510 = vmatpush.bf16.msra.mxu0 %v1257
        %1511 = vmatmul.bf16.gmra.mxu0 %v1501
        %v1512 = vpop.f32.mrf.mxu0
        %v1513 = vadd.f32 %v1248, %v1512
        %v1514 = vpop.f32.mrf.mxu0
        %v1515 = vadd.f32 %v1248, %v1514
        %1516 = vdwg.mxu0
        %v1517 = vadd.f32 %v401, %v1513
        %v1518 = vadd.f32 %v402, %v1515
        %v1519 = vsel %vm438, %v1517, 0.0
        %1520 = vadd.xlane.f32.xlu0 %v1519
        %v1521 = vpop.xlane.xlu0 %1520
        %v1522 = vsel %vm1283, %v1518, 0.0
        %1523 = vadd.xlane.f32.xlu0 %v1522
        %v1524 = vpop.xlane.xlu0 %1523
        %v1525 = vmul.f32 %v1521, %v1293
        %v1526 = vmul.f32 %v1524, %v1293
        %v1527 = vsub.f32 %v1517, %v1525
        %v1528 = vsub.f32 %v1518, %v1526
        %v1529 = vmul.f32 %v1527, %v1527
        %v1530 = vmul.f32 %v1528, %v1528
        %v1531 = vsel %vm438, %v1529, 0.0
        %1532 = vadd.xlane.f32.xlu0 %v1531
        %v1533 = vpop.xlane.xlu0 %1532
        %v1534 = vsel %vm1283, %v1530, 0.0
        %1535 = vadd.xlane.f32.xlu0 %v1534
        %v1536 = vpop.xlane.xlu0 %1535
        %v1537 = vmul.f32 %v1533, %v1293
        %v1538 = vmul.f32 %v1536, %v1293
        %v1539 = vadd.f32 %v1537, 1e-05
        %v1540 = vadd.f32 %v1538, 1e-05
        %v1541 = vrsqrt.pop %v1539
        %v1542 = vmul.f32 %v1541, %v1539
        %v1543 = vmul.f32 %v1542, %v1541
        %v1544 = vmul.f32 0.5, %v1543
        %v1545 = vsub.f32 1.5, %v1544
        %v1546 = vmul.f32 %v1541, %v1545
        %vm1547 = vweird.f32 %v1539
        %vm1548 = vweird.f32 %v1541
        %vm1549 = vmor %vm1547, %vm1548
        %v1550 = vsel %vm1549, %v1541, %v1546
        %v1551 = vrsqrt.pop %v1540
        %v1552 = vmul.f32 %v1551, %v1540
        %v1553 = vmul.f32 %v1552, %v1551
        %v1554 = vmul.f32 0.5, %v1553
        %v1555 = vsub.f32 1.5, %v1554
        %v1556 = vmul.f32 %v1551, %v1555
        %vm1557 = vweird.f32 %v1540
        %vm1558 = vweird.f32 %v1551
        %vm1559 = vmor %vm1557, %vm1558
        %v1560 = vsel %vm1559, %v1551, %v1556
        %v1561 = vmul.f32 %v1527, %v1550
        %v1562 = vmul.f32 %v1528, %v1560
        %v1563 = vmul.f32 %v1561, %v1332
        %v1564 = vmul.f32 %v1562, %v1332
        %v1565 = vadd.f32 %v1563, %v1335
        %v1566 = vadd.f32 %v1564, %v1335
        %v1567 = vpack.c.bf16 %v1566, %v1565
        %v1569 = vsel %vm438, %v1567, 0
        %1571 = vmatpush.bf16.msra.mxu0 0
        %1572 = vmatpush.bf16.msra.mxu0 0
        %1573 = vmatpush.bf16.msra.mxu0 0
        %1574 = vmatpush.bf16.msra.mxu0 0
        %1575 = vmatpush.bf16.msra.mxu0 0
        %1576 = vmatpush.bf16.msra.mxu0 0
        %1577 = vmatpush.bf16.msra.mxu0 %v1349
        %1578 = vmatpush.bf16.msra.mxu0 %v1348
        %1579 = vmatmul.bf16.gmra.mxu0 %v1569
        %v1580 = vpop.f32.mrf.mxu0
        %v1581 = vadd.f32 %v1339, %v1580
        %v1582 = vpop.f32.mrf.mxu0
        %v1583 = vadd.f32 %v1339, %v1582
        %1584 = vdwg.mxu0
        %v1585 = vmax.f32 %v1581, 0.0
        %v1586 = vmax.f32 %v1583, 0.0
        %v1587 = vpack.c.bf16 %v1586, %v1585
        %v1589 = vsel %vm1397, %v1587, 0
        %1591 = vmatpush.bf16.msra.mxu0 0
        %1592 = vmatpush.bf16.msra.mxu0 0
        %1593 = vmatpush.bf16.msra.mxu0 0
        %1594 = vmatpush.bf16.msra.mxu0 0
        %1595 = vmatpush.bf16.msra.mxu0 %v1392
        %1596 = vmatpush.bf16.msra.mxu0 %v1391
        %1597 = vmatpush.bf16.msra.mxu0 %v1390
        %1598 = vmatpush.bf16.msra.mxu0 %v1389
        %1599 = vmatmul.bf16.gmra.mxu0 %v1589
        %v1600 = vpop.f32.mrf.mxu0
        %v1601 = vadd.f32 %v1372, %v1600
        %v1602 = vpop.f32.mrf.mxu0
        %v1603 = vadd.f32 %v1372, %v1602
        %1604 = vdwg.mxu0
        %v1605 = vadd.f32 %v1565, %v1601
        %v1606 = vadd.f32 %v1566, %v1603
        %v1607 = vsel %vm438, %v1605, 0.0
        %1608 = vadd.xlane.f32.xlu0 %v1607
        %v1609 = vpop.xlane.xlu0 %1608
        %v1610 = vsel %vm1283, %v1606, 0.0
        %1611 = vadd.xlane.f32.xlu0 %v1610
        %v1612 = vpop.xlane.xlu0 %1611
        %v1613 = vmul.f32 %v1609, %v1293
        %v1614 = vmul.f32 %v1612, %v1293
        %v1615 = vsub.f32 %v1605, %v1613
        %v1616 = vsub.f32 %v1606, %v1614
        %v1617 = vmul.f32 %v1615, %v1615
        %v1618 = vmul.f32 %v1616, %v1616
        %v1619 = vsel %vm438, %v1617, 0.0
        %1620 = vadd.xlane.f32.xlu0 %v1619
        %v1621 = vpop.xlane.xlu0 %1620
        %v1622 = vsel %vm1283, %v1618, 0.0
        %1623 = vadd.xlane.f32.xlu0 %v1622
        %v1624 = vpop.xlane.xlu0 %1623
        %v1625 = vmul.f32 %v1621, %v1293
        %v1626 = vmul.f32 %v1624, %v1293
        %v1627 = vadd.f32 %v1625, 1e-05
        %v1628 = vadd.f32 %v1626, 1e-05
        %v1629 = vrsqrt.pop %v1627
        %v1630 = vmul.f32 %v1629, %v1627
        %v1631 = vmul.f32 %v1630, %v1629
        %v1632 = vmul.f32 0.5, %v1631
        %v1633 = vsub.f32 1.5, %v1632
        %v1634 = vmul.f32 %v1629, %v1633
        %vm1635 = vweird.f32 %v1627
        %vm1636 = vweird.f32 %v1629
        %vm1637 = vmor %vm1635, %vm1636
        %v1638 = vsel %vm1637, %v1629, %v1634
        %v1639 = vrsqrt.pop %v1628
        %v1640 = vmul.f32 %v1639, %v1628
        %v1641 = vmul.f32 %v1640, %v1639
        %v1642 = vmul.f32 0.5, %v1641
        %v1643 = vsub.f32 1.5, %v1642
        %v1644 = vmul.f32 %v1639, %v1643
        %vm1645 = vweird.f32 %v1628
        %vm1646 = vweird.f32 %v1639
        %vm1647 = vmor %vm1645, %vm1646
        %v1648 = vsel %vm1647, %v1639, %v1644
        %v1649 = vmul.f32 %v1615, %v1638
        %v1650 = vmul.f32 %v1616, %v1648
        %v1651 = vmul.f32 %v1649, %v1461
        %v1652 = vmul.f32 %v1650, %v1461
        %v1653 = vadd.f32 %v1651, %v1464
        %v1654 = vadd.f32 %v1652, %v1464
        %s1655 = scalar_lea.vmem %s9, 16
        %1656 = vst.msk [vmem:[%s1655] sm:$0xff] %vm438, %v1653
        %1657 = vst.msk [vmem:[%s1655 + $0x8] sm:$0xf] %vm1283, %v1654
        // Predicated region
        $region57: #{tpu_custom_call.1} parent=47 // pred_check
          %p1658 = pneg %p221
        $region58: #{tpu_custom_call.1} parent=47 // pred_check_branch
          %1660 = sbr.rel (%p1658) target = $region60
        $region59: #{tpu_custom_call.1} parent=47 // pred_region
          _
        $region60: #{tpu_custom_call.1} parent=47 // pred_fallthru
          _
        // Predicated region
        $region61: #{tpu_custom_call.1} parent=47 // pred_check
          %p1661 = pneg %p221
        $region62: #{tpu_custom_call.1} parent=47 // pred_check_branch
          %1663 = sbr.rel (%p1661) target = $region64
        $region63: #{tpu_custom_call.1} parent=47 // pred_region
          _
        $region64: #{tpu_custom_call.1} parent=47 // pred_fallthru
          _
      $region48: #{tpu_custom_call.1} parent=5 // pred_fallthru
        _
      %p1664 = scmp.le.s32.totalorder 2, %s31
      // Predicated region
      $region65: #{tpu_custom_call.1} parent=5 // pred_check
        %p1665 = pneg %p1664
      $region66: #{tpu_custom_call.1} parent=5 // pred_check_branch
        %1667 = sbr.rel (%p1665) target = $region68
      $region67: #{tpu_custom_call.1} parent=5 // pred_region
        %s1668 = ssub.s32 %s31, 2
      $region68: #{tpu_custom_call.1} parent=5 // pred_fallthru
        _
    $region6: #{tpu_custom_call.1} parent=1 // loop_footer
      %s35 = sadd.s32 1, %s31
    $region7: #{tpu_custom_call.1} parent=1 // loop_footer_branch
      %30 = sbr.rel target = $region3
    $region8: #{tpu_custom_call.1} parent=1 // loop_exit
      _
    %1669 = vsyncpa [#allocation6], 1
    %s1670 = scalar_lea.sflag [#allocation6], 1
    %1671 = vsyncpa %s1670, 1

</llo_original>
